<compile_context>
chip_gen: v7x
topology: tpu7x:2x2x1
jax: 0.10.0
libtpu: 0.0.40
codegen_flags: <defaults>
</compile_context>

<pallas_src>
import functools
import math

import jax
import jax.numpy as jnp
import numpy as np
from jax.experimental import pallas as pl
from jax.experimental.pallas import tpu as pltpu


# ----------------------------------------------------------------------------
# Kernel
# ----------------------------------------------------------------------------
def _bert_layer_kernel(
    x_ref,            # (1, R, H)   R = batch_block * seq_len
    w_qkv_ref,        # (H, 3H)     [wq*(1/d) | wk | wv]
    b_qkv_ref,        # (1, 3H)
    w_ao_ref,         # (H, H)      attention output dense
    vecs_ref,         # (6, H)      rows: bo, ln1_g, ln1_b, bo2, ln2_g, ln2_b
    w_in_ref,         # (H, I)      intermediate dense
    b_in_ref,         # (1, I)
    w_fo_ref,         # (I, H)      BertOutput dense
    pw1a_ref,         # (R, R+1)    [block-diag Wa | tiled ba]   (GLU value half)
    pw1g_ref,         # (R, R+1)    [block-diag Wg | tiled bg]   (GLU gate half)
    conv_rest_ref,    # (R, K+4+R+1) [dw | bn_g | bn_b | bn_rm | bn_rv | block-diag W2 | b2]
    out_ref,          # (1, R, H)
    probs_ref=None,   # (1, NH, R, R)  present iff output_attentions
    *, num_heads, head_dim, seq_len, batch_block, conv_kernel_size, output_attentions,
):
    H = x_ref.shape[2]
    S = seq_len
    d = head_dim
    K = conv_kernel_size
    R = batch_block * S

    x2 = x_ref[0].astype(jnp.float32)                                  # (R, H)

    # ---------------- BertSelfAttention ----------------
    # One wide MXU matmul for Q/K/V.  The module's net 1/d attention scaling is
    # already folded into the packed query columns of w_qkv / b_qkv.
    qkv = jnp.dot(x2, w_qkv_ref[...], preferred_element_type=jnp.float32) + b_qkv_ref[...]
    q = qkv[:, 0:H]
    k = qkv[:, H:2 * H]
    v = qkv[:, 2 * H:3 * H]

    lane = jax.lax.broadcasted_iota(jnp.int32, (R, H), 1)
    rid = jax.lax.broadcasted_iota(jnp.int32, (R, R), 0)
    cid = jax.lax.broadcasted_iota(jnp.int32, (R, R), 1)
    # Block-diagonal (per folded batch element) attention mask (comparisons only).
    same_batch = jnp.zeros((R, R), jnp.bool_)
    for b in range(batch_block):
        lo, hi = b * S, (b + 1) * S
        same_batch = same_batch | (((rid >= lo) & (rid < hi)) & ((cid >= lo) & (cid < hi)))
    neg_big = jnp.float32(-1e30)

    ctx = jnp.zeros((R, H), jnp.float32)
    for h in range(num_heads):
        head_mask = (lane >= h * d) & (lane < (h + 1) * d)
        qh = jnp.where(head_mask, q, 0.0)
        # Contract the full hidden axis; zeroed non-head columns of q make this
        # exactly q_h @ k_h^T without materializing per-head slices or kh.T.
        s = jax.lax.dot_general(
            qh, k,
            dimension_numbers=(((1,), (1,)), ((), ())),
            preferred_element_type=jnp.float32,
        )
        s = jnp.where(same_batch, s, neg_big)                          # block-diag mask
        s = s - jnp.max(s, axis=-1, keepdims=True)
        e = jnp.exp(s)
        # NOTE: exact divide (not pl.reciprocal(approx=True)) so the returned
        # fp32 attention_probs stay within 1e-4 of the reference.
        p = e / jnp.sum(e, axis=-1, keepdims=True)                     # (R, R)
        if output_attentions:
            probs_ref[0, h] = p.astype(probs_ref.dtype)
        vh = jnp.where(head_mask, v, 0.0)
        # Accumulate this head's context (only its columns are non-zero).
        ctx = ctx + jnp.dot(p, vh, preferred_element_type=jnp.float32)

    def layer_norm(y, gamma, beta):
        mean = jnp.mean(y, axis=-1, keepdims=True)
        var = jnp.mean((y - mean) ** 2, axis=-1, keepdims=True)
        return (y - mean) * jax.lax.rsqrt(var + 1e-12) * gamma + beta

    bo    = vecs_ref[pl.ds(0, 1), :]
    ln1_g = vecs_ref[pl.ds(1, 1), :]
    ln1_b = vecs_ref[pl.ds(2, 1), :]
    bo2   = vecs_ref[pl.ds(3, 1), :]
    ln2_g = vecs_ref[pl.ds(4, 1), :]
    ln2_b = vecs_ref[pl.ds(5, 1), :]

    # ---------------- BertSelfOutput ----------------
    attn = jnp.dot(ctx, w_ao_ref[...], preferred_element_type=jnp.float32) + bo
    attn_ln = layer_norm(attn + x2, ln1_g, ln1_b)                      # (R, H)

    # ---------------- BertIntermediate ----------------
    inter = jnp.dot(attn_ln, w_in_ref[...], preferred_element_type=jnp.float32) + b_in_ref[...]
    # TODO(synk): tanh-approximate GELU (exact erf-based GELU not used).
    inter = 0.5 * inter * (
        1.0 + jnp.tanh(0.7978845608028654 * (inter + 0.044715 * inter * inter * inter))
    )

    # ---------------- BertOutput (dense -> ConvModule -> residual -> LN) ----------------
    hid = jnp.dot(inter, w_fo_ref[...], preferred_element_type=jnp.float32) + bo2  # (R, H)

    # ConvModule treats rows as (batch, channel=seq position) and lanes as length.
    # Pointwise conv 1 (both GLU halves); weights are block-diagonal over the
    # folded batch so each half is a single matmul.
    pw1a = pw1a_ref[...]
    pw1g = pw1g_ref[...]
    wa, ba = pw1a[:, 0:R], pw1a[:, R:R + 1]
    wg, bg = pw1g[:, 0:R], pw1g[:, R:R + 1]
    a = jnp.dot(wa, hid, preferred_element_type=jnp.float32) + ba
    g = jnp.dot(wg, hid, preferred_element_type=jnp.float32) + bg
    glu = a * (1.0 / (1.0 + jnp.exp(-g)))                              # GLU(dim=channels)

    cr = conv_rest_ref[...]                                            # (R, K+4+R+1)
    dw    = cr[:, 0:K]
    bn_g  = cr[:, K:K + 1]
    bn_b  = cr[:, K + 1:K + 2]
    bn_rm = cr[:, K + 2:K + 3]
    bn_rv = cr[:, K + 3:K + 4]
    pw2_w = cr[:, K + 4:K + 4 + R]
    pw2_b = cr[:, K + 4 + R:K + 5 + R]

    # DepthwiseConv1d(k=31, pad=15, groups=C): unrolled tap loop on a zero-padded
    # slab.  (pltpu.roll considered; value lane-slices kept for lowering robustness.)
    pad = (K - 1) // 2
    zpad = jnp.zeros((R, pad), jnp.float32)
    gp = jnp.concatenate([zpad, glu, zpad], axis=1)                    # (R, H + 2*pad)
    z = jnp.zeros((R, H), jnp.float32)
    for kk in range(K):
        z = z + gp[:, kk:kk + H] * dw[:, kk:kk + 1]

    # BatchNorm1d over channels (eval mode, running statistics, eps=1e-5).
    z = (z - bn_rm) * jax.lax.rsqrt(bn_rv + 1e-5) * bn_g + bn_b

    # Pointwise conv 2 (block-diagonal over the folded batch).
    conv = jnp.dot(pw2_w, z, preferred_element_type=jnp.float32) + pw2_b

    out_ref[0] = layer_norm(conv + attn_ln, ln2_g, ln2_b).astype(out_ref.dtype)


# ----------------------------------------------------------------------------
# Host-side parameter packing (done once, outside the hot path)
# ----------------------------------------------------------------------------
def _block_diag(w, n):
    if n == 1:
        return w
    r, c = w.shape
    out = jnp.zeros((n * r, n * c), w.dtype)
    for i in range(n):
        out = out.at[i * r:(i + 1) * r, i * c:(i + 1) * c].set(w)
    return out


def pack_bert_layer_params(params, *, num_heads, batch_block):
    """Pack the 27 raw parameters into 10 DMA-friendly slabs (call once)."""
    (wq, bq, wk, bk, wv, bv, wo, bo, ln1_g, ln1_b,
     wi, bi, wo2, bo2,
     pw1_wa, pw1_ba, pw1_wb, pw1_bb,
     dw_w, bn_g, bn_b, bn_rm, bn_rv,
     pw2_w, pw2_b, ln2_g, ln2_b) = params

    H = wq.shape[0]
    d = H // num_heads
    # Net attention scaling in the module is d**-0.5 (query) * 1/sqrt(d) (scores) = 1/d.
    scale = 1.0 / d
    w_qkv = jnp.concatenate([wq * scale, wk, wv], axis=1)              # (H, 3H)
    b_qkv = jnp.concatenate([bq * scale, bk, bv], axis=1)              # (1, 3H)
    vecs = jnp.concatenate([bo, ln1_g, ln1_b, bo2, ln2_g, ln2_b], axis=0)  # (6, H)

    Bb = batch_block

    def tile_rows(v):
        return jnp.tile(v, (Bb, 1))

    pw1a = jnp.concatenate([_block_diag(pw1_wa, Bb), tile_rows(pw1_ba)], axis=1)
    pw1g = jnp.concatenate([_block_diag(pw1_wb, Bb), tile_rows(pw1_bb)], axis=1)
    conv_rest = jnp.concatenate(
        [tile_rows(dw_w), tile_rows(bn_g), tile_rows(bn_b), tile_rows(bn_rm),
         tile_rows(bn_rv), _block_diag(pw2_w, Bb), tile_rows(pw2_b)], axis=1)

    return (w_qkv, b_qkv, wo, vecs, wi, bi, wo2, pw1a, pw1g, conv_rest)


# ----------------------------------------------------------------------------
# Wrapper
# ----------------------------------------------------------------------------
def bert_layer_packed(x, packed, *, num_heads, batch_block, output_attentions=True):
    """Pallas BertLayer.forward with pre-packed parameters.

    Returns (layer_output, attention_probs) if output_attentions else layer_output.
    """
    B, S, H = x.shape
    assert H % num_heads == 0
    Bb = batch_block
    assert B % Bb == 0, "batch must be divisible by batch_block"
    G = B // Bb
    R = Bb * S
    d = H // num_heads
    nh = num_heads

    (w_qkv, b_qkv, w_ao, vecs, w_in, b_in, w_fo, pw1a, pw1g, conv_rest) = packed
    assert conv_rest.shape[0] == R, \
        "ConvModule channel count (x batch_block) must equal batch_block*seq_len"
    K = conv_rest.shape[1] - (4 + R + 1)
    inter_size = w_in.shape[1]

    x2 = x.reshape(G, R, H)   # fold batch_block elements into each grid step

    kernel = functools.partial(
        _bert_layer_kernel,
        num_heads=nh, head_dim=d, seq_len=S, batch_block=Bb,
        conv_kernel_size=K, output_attentions=output_attentions,
    )

    def const_spec(arr):
        return pl.BlockSpec(arr.shape, lambda g, _n=arr.ndim: (0,) * _n)

    in_specs = [pl.BlockSpec((1, R, H), lambda g: (g, 0, 0))]
    in_specs += [const_spec(p) for p in packed]

    if output_attentions:
        out_specs = [
            pl.BlockSpec((1, R, H), lambda g: (g, 0, 0)),
            pl.BlockSpec((1, nh, R, R), lambda g: (g, 0, 0, 0)),
        ]
        out_shape = (
            jax.ShapeDtypeStruct((G, R, H), x.dtype),
            jax.ShapeDtypeStruct((G, nh, R, R), x.dtype),  # probs in x.dtype
        )
    else:
        out_specs = pl.BlockSpec((1, R, H), lambda g: (g, 0, 0))
        out_shape = jax.ShapeDtypeStruct((G, R, H), x.dtype)

    # Advisory cost estimate (helps XLA schedule around the custom call).
    flops = 2 * G * (
        R * H * 3 * H              # fused QKV
        + 2 * nh * R * R * H       # scores + context
        + R * H * H                # attention output dense
        + 2 * R * H * inter_size   # intermediate + ffn output dense
        + 2 * R * R * H            # pointwise conv 1 (both GLU halves)
        + R * K * H                # depthwise conv
        + R * R * H                # pointwise conv 2
    )
    transcendentals = G * (nh * R * R + R * inter_size + R * H)
    bytes_accessed = (
        int(x.size) * x.dtype.itemsize
        + sum(int(p.size) * p.dtype.itemsize for p in packed)
        + G * R * H * x.dtype.itemsize
        + (G * nh * R * R * x.dtype.itemsize if output_attentions else 0)
    )

    results = pl.pallas_call(
        kernel,
        out_shape=out_shape,
        grid_spec=pltpu.PrefetchScalarGridSpec(
            num_scalar_prefetch=0,
            grid=(G,),
            in_specs=in_specs,
            out_specs=out_specs,
        ),
        compiler_params=pltpu.CompilerParams(
            # "parallel" lets the batch-step axis shard across v7x's two TensorCores
            # when batch_block < B; with batch_block=B there is a single step.
            dimension_semantics=("parallel",),
        ),
        cost_estimate=pl.CostEstimate(
            flops=flops, transcendentals=transcendentals, bytes_accessed=bytes_accessed),
    )(x2, *packed)

    if output_attentions:
        out2, probs_raw = results
    else:
        out2 = results

    out = out2.reshape(B, S, H)
    if not output_attentions:
        return out

    # Extract the per-batch diagonal (S, S) blocks of each step's block-diagonal probs.
    p = probs_raw.reshape(G, nh, Bb, S, Bb, S)
    idx = jnp.arange(Bb)
    p = p[:, :, idx, :, idx, :]                     # (Bb, G, nh, S, S)
    probs = jnp.moveaxis(p, 0, 1).reshape(B, nh, S, S)
    return out, probs


def bert_layer(x, params, *, num_heads, kvs=None, batch_block=None, output_attentions=True):
    """Convenience wrapper: packs raw params then calls the Pallas kernel.

    For repeated calls, pack once with pack_bert_layer_params and use
    bert_layer_packed directly.  On v7x, pass batch_block = B // 2 so each
    TensorCore takes half the batch; on v5e/v6e leave the default (fold all).
    """
    if kvs is not None:
        # TODO(synk): kvs concat path (kv_weight * kvs prepended to K/V) not implemented.
        raise NotImplementedError("kvs must be None for the Pallas kernel")
    B = x.shape[0]
    if batch_block is None:
        batch_block = B
    packed = pack_bert_layer_params(params, num_heads=num_heads, batch_block=batch_block)
    return bert_layer_packed(x, packed, num_heads=num_heads, batch_block=batch_block,
                             output_attentions=output_attentions)


# ----------------------------------------------------------------------------
# Plain-JAX reference (same math as the kernel) for correctness checking
# ----------------------------------------------------------------------------
def bert_layer_reference(x, params, *, num_heads):
    (wq, bq, wk, bk, wv, bv, wo, bo, ln1_g, ln1_b,
     wi, bi, wo2, bo2,
     pw1_wa, pw1_ba, pw1_wb, pw1_bb,
     dw_w, bn_g, bn_b, bn_rm, bn_rv,
     pw2_w, pw2_b, ln2_g, ln2_b) = params

    B, S, H = x.shape
    d = H // num_heads
    conv_k = dw_w.shape[1]
    hp = jax.lax.Precision.HIGHEST

    q = (jnp.dot(x, wq, precision=hp) + bq) * (d ** -0.5)
    k = jnp.dot(x, wk, precision=hp) + bk
    v = jnp.dot(x, wv, precision=hp) + bv

    def split(t):  # (B,S,H) -> (B,nH,S,d)
        return t.reshape(B, S, num_heads, d).transpose(0, 2, 1, 3)

    qh, kh, vh = split(q), split(k), split(v)
    scores = jnp.einsum("bhqd,bhkd->bhqk", qh, kh, precision=hp) / math.sqrt(d)
    probs = jax.nn.softmax(scores, axis=-1)
    ctx = jnp.einsum("bhqk,bhkd->bhqd", probs, vh, precision=hp)
    ctx = ctx.transpose(0, 2, 1, 3).reshape(B, S, H)

    def layer_norm(y, g, b):
        mean = jnp.mean(y, axis=-1, keepdims=True)
        var = jnp.mean((y - mean) ** 2, axis=-1, keepdims=True)
        return (y - mean) * jax.lax.rsqrt(var + 1e-12) * g + b

    attn_ln = layer_norm(jnp.dot(ctx, wo, precision=hp) + bo + x, ln1_g, ln1_b)

    inter = jnp.dot(attn_ln, wi, precision=hp) + bi
    inter = 0.5 * inter * (
        1.0 + jnp.tanh(0.7978845608028654 * (inter + 0.044715 * inter * inter * inter))
    )

    h1 = jnp.dot(inter, wo2, precision=hp) + bo2  # (B, C=S, L=H)

    a = jnp.einsum("oc,bcl->bol", pw1_wa, h1, precision=hp) + pw1_ba[None]
    g = jnp.einsum("oc,bcl->bol", pw1_wb, h1, precision=hp) + pw1_bb[None]
    glu = a * (1.0 / (1.0 + jnp.exp(-g)))

    pad = (conv_k - 1) // 2
    gp = jnp.pad(glu, ((0, 0), (0, 0), (pad, pad)))
    z = jnp.zeros_like(glu)
    for kk in range(conv_k):
        z = z + gp[:, :, kk:kk + H] * dw_w[None, :, kk:kk + 1]

    z = (z - bn_rm[None]) * jax.lax.rsqrt(bn_rv[None] + 1e-5) * bn_g[None] + bn_b[None]
    conv_out = jnp.einsum("oc,bcl->bol", pw2_w, z, precision=hp) + pw2_b[None]

    out = layer_norm(conv_out + attn_ln, ln2_g, ln2_b)
    return out, probs


# ----------------------------------------------------------------------------
# Deterministic parameter construction
# ----------------------------------------------------------------------------
def make_params(key, hidden, intermediate, channels, conv_k=31):
    H, I, C = hidden, intermediate, channels
    keys = iter(jax.random.split(key, 32))

    def nk():
        return next(keys)

    def lin(fan_in, w_shape, b_shape):
        s = 1.0 / math.sqrt(fan_in)
        w = jax.random.uniform(nk(), w_shape, jnp.float32, -s, s)
        b = jax.random.uniform(nk(), b_shape, jnp.float32, -s, s)
        return w, b

    wq, bq = lin(H, (H, H), (1, H))
    wk, bk = lin(H, (H, H), (1, H))
    wv, bv = lin(H, (H, H), (1, H))
    wo, bo = lin(H, (H, H), (1, H))
    ln1_g = 1.0 + 0.1 * jax.random.normal(nk(), (1, H), jnp.float32)
    ln1_b = 0.1 * jax.random.normal(nk(), (1, H), jnp.float32)
    wi, bi = lin(H, (H, I), (1, I))
    wo2, bo2 = lin(I, (I, H), (1, H))
    pw1_wa, pw1_ba = lin(C, (C, C), (C, 1))   # pointwise conv1 -> GLU "value" half
    pw1_wb, pw1_bb = lin(C, (C, C), (C, 1))   # pointwise conv1 -> GLU "gate" half
    s_dw = 1.0 / math.sqrt(conv_k)
    dw_w = jax.random.uniform(nk(), (C, conv_k), jnp.float32, -s_dw, s_dw)
    bn_g = 1.0 + 0.1 * jax.random.normal(nk(), (C, 1), jnp.float32)
    bn_b = 0.1 * jax.random.normal(nk(), (C, 1), jnp.float32)
    bn_rm = 0.1 * jax.random.normal(nk(), (C, 1), jnp.float32)
    bn_rv = jax.random.uniform(nk(), (C, 1), jnp.float32, 0.5, 1.5)
    pw2_w, pw2_b = lin(C, (C, C), (C, 1))
    ln2_g = 1.0 + 0.1 * jax.random.normal(nk(), (1, H), jnp.float32)
    ln2_b = 0.1 * jax.random.normal(nk(), (1, H), jnp.float32)

    return (wq, bq, wk, bk, wv, bv, wo, bo, ln1_g, ln1_b,
            wi, bi, wo2, bo2,
            pw1_wa, pw1_ba, pw1_wb, pw1_bb,
            dw_w, bn_g, bn_b, bn_rm, bn_rv,
            pw2_w, pw2_b, ln2_g, ln2_b)


if __name__ == "__main__":
    # Shapes consistent with the module: ConvModule(in_channels=3) inside
    # BertOutput forces sequence length S=3; hidden=32, 4 heads, intermediate=64.
    B, S, H, NH, I = 2, 3, 32, 4, 64

    key = jax.random.PRNGKey(0)
    k_x, k_p = jax.random.split(key)
    x = jax.random.normal(k_x, (B, S, H), jnp.float32)
    params = make_params(k_p, H, I, S)

    ref_out, ref_probs = bert_layer_reference(x, params, num_heads=NH)

    # (1) Default configuration: whole batch folded into a single grid step
    #     (best on the single-TensorCore v5e/v6e).
    packed = pack_bert_layer_params(params, num_heads=NH, batch_block=B)
    out, probs = bert_layer_packed(x, packed, num_heads=NH, batch_block=B)
    jax.block_until_ready((out, probs))
    np.testing.assert_allclose(np.asarray(out), np.asarray(ref_out), atol=1e-4, rtol=1e-4)
    np.testing.assert_allclose(np.asarray(probs), np.asarray(ref_probs), atol=1e-4, rtol=1e-4)

    # (2) v7x-style configuration: two parallel grid steps (one per TensorCore).
    packed2 = pack_bert_layer_params(params, num_heads=NH, batch_block=B // 2)
    out2, probs2 = bert_layer_packed(x, packed2, num_heads=NH, batch_block=B // 2)
    jax.block_until_ready((out2, probs2))
    np.testing.assert_allclose(np.asarray(out2), np.asarray(ref_out), atol=1e-4, rtol=1e-4)
    np.testing.assert_allclose(np.asarray(probs2), np.asarray(ref_probs), atol=1e-4, rtol=1e-4)

    print("KERNEL_OK")
</pallas_src>

<mosaic_0001>
module attributes {stable_mosaic.version = 11 : i64} {
  func.func @_bert_layer_kernel(%arg0: i32, %arg1: memref<1x6x32xf32, #tpu.memory_space<vmem>>, %arg2: memref<32x96xf32, #tpu.memory_space<vmem>>, %arg3: memref<1x96xf32, #tpu.memory_space<vmem>>, %arg4: memref<32x32xf32, #tpu.memory_space<vmem>>, %arg5: memref<6x32xf32, #tpu.memory_space<vmem>>, %arg6: memref<32x64xf32, #tpu.memory_space<vmem>>, %arg7: memref<1x64xf32, #tpu.memory_space<vmem>>, %arg8: memref<64x32xf32, #tpu.memory_space<vmem>>, %arg9: memref<6x7xf32, #tpu.memory_space<vmem>>, %arg10: memref<6x7xf32, #tpu.memory_space<vmem>>, %arg11: memref<6x42xf32, #tpu.memory_space<vmem>>, %arg12: memref<1x6x32xf32, #tpu.memory_space<vmem>>, %arg13: memref<1x4x6x6xf32, #tpu.memory_space<vmem>>) attributes {dimension_semantics = [#tpu.dimension_semantics<parallel>], iteration_bounds = array<i64: 1>, scalar_prefetch = 0 : i64, scratch_operands = 0 : i64, tpu.core_type = #tpu.core_type<tc>, window_params = [{transform_indices = @transform_0, window_bounds = array<i64: 1, 6, 32>}, {pipeline_mode = #tpu.pipeline_mode<synchronous>, transform_indices = @transform_1, window_bounds = array<i64: 32, 96>}, {pipeline_mode = #tpu.pipeline_mode<synchronous>, transform_indices = @transform_2, window_bounds = array<i64: 1, 96>}, {pipeline_mode = #tpu.pipeline_mode<synchronous>, transform_indices = @transform_3, window_bounds = array<i64: 32, 32>}, {pipeline_mode = #tpu.pipeline_mode<synchronous>, transform_indices = @transform_4, window_bounds = array<i64: 6, 32>}, {pipeline_mode = #tpu.pipeline_mode<synchronous>, transform_indices = @transform_5, window_bounds = array<i64: 32, 64>}, {pipeline_mode = #tpu.pipeline_mode<synchronous>, transform_indices = @transform_6, window_bounds = array<i64: 1, 64>}, {pipeline_mode = #tpu.pipeline_mode<synchronous>, transform_indices = @transform_7, window_bounds = array<i64: 64, 32>}, {pipeline_mode = #tpu.pipeline_mode<synchronous>, transform_indices = @transform_8, window_bounds = array<i64: 6, 7>}, {pipeline_mode = #tpu.pipeline_mode<synchronous>, transform_indices = @transform_9, window_bounds = array<i64: 6, 7>}, {pipeline_mode = #tpu.pipeline_mode<synchronous>, transform_indices = @transform_10, window_bounds = array<i64: 6, 42>}, {transform_indices = @transform_11, window_bounds = array<i64: 1, 6, 32>}, {transform_indices = @transform_12, window_bounds = array<i64: 1, 4, 6, 6>}]} {
    %c0 = arith.constant 0 : index
    %c0_0 = arith.constant 0 : index
    %c0_1 = arith.constant 0 : index
    %0 = vector.load %arg1[%c0, %c0_0, %c0_1] : memref<1x6x32xf32, #tpu.memory_space<vmem>>, vector<1x6x32xf32>
    %1 = vector.shape_cast %0 : vector<1x6x32xf32> to vector<6x32xf32>
    %c0_2 = arith.constant 0 : index
    %c0_3 = arith.constant 0 : index
    %2 = vector.load %arg2[%c0_2, %c0_3] : memref<32x96xf32, #tpu.memory_space<vmem>>, vector<32x96xf32>
    %cst = arith.constant dense<0.000000e+00> : vector<6x96xf32>
    %3 = tpu.matmul %1, %2, %cst {dimension_numbers = #tpu.dot_dimension_numbers<[1], [0], [0], [1], [0, 0, 1, 1], [], []>} : vector<6x32xf32>, vector<32x96xf32>, vector<6x96xf32> -> vector<6x96xf32>
    %c0_4 = arith.constant 0 : index
    %c0_5 = arith.constant 0 : index
    %4 = vector.load %arg3[%c0_4, %c0_5] : memref<1x96xf32, #tpu.memory_space<vmem>>, vector<1x96xf32>
    %5 = vector.broadcast %4 : vector<1x96xf32> to vector<6x96xf32>
    %6 = arith.addf %3, %5 : vector<6x96xf32>
    %7 = vector.extract_strided_slice %6 {offsets = [0, 0], sizes = [6, 32], strides = [1, 1]} : vector<6x96xf32> to vector<6x32xf32>
    %8 = vector.extract_strided_slice %6 {offsets = [0, 32], sizes = [6, 32], strides = [1, 1]} : vector<6x96xf32> to vector<6x32xf32>
    %9 = vector.extract_strided_slice %6 {offsets = [0, 64], sizes = [6, 32], strides = [1, 1]} : vector<6x96xf32> to vector<6x32xf32>
    %10 = tpu.iota {dimensions = array<i32: 1>} : vector<6x32xi32>
    %11 = tpu.iota {dimensions = array<i32: 0>} : vector<6x6xi32>
    %12 = tpu.iota {dimensions = array<i32: 1>} : vector<6x6xi32>
    %false = arith.constant false
    %13 = vector.broadcast %false : i1 to vector<6x6xi1>
    %c0_i32 = arith.constant 0 : i32
    %14 = vector.broadcast %c0_i32 : i32 to vector<6x6xi32>
    %15 = arith.cmpi sge, %11, %14 : vector<6x6xi32>
    %c3_i32 = arith.constant 3 : i32
    %16 = vector.broadcast %c3_i32 : i32 to vector<6x6xi32>
    %17 = arith.cmpi slt, %11, %16 : vector<6x6xi32>
    %18 = arith.andi %15, %17 : vector<6x6xi1>
    %c0_i32_6 = arith.constant 0 : i32
    %19 = vector.broadcast %c0_i32_6 : i32 to vector<6x6xi32>
    %20 = arith.cmpi sge, %12, %19 : vector<6x6xi32>
    %c3_i32_7 = arith.constant 3 : i32
    %21 = vector.broadcast %c3_i32_7 : i32 to vector<6x6xi32>
    %22 = arith.cmpi slt, %12, %21 : vector<6x6xi32>
    %23 = arith.andi %20, %22 : vector<6x6xi1>
    %24 = arith.andi %18, %23 : vector<6x6xi1>
    %25 = arith.ori %13, %24 : vector<6x6xi1>
    %c3_i32_8 = arith.constant 3 : i32
    %26 = vector.broadcast %c3_i32_8 : i32 to vector<6x6xi32>
    %27 = arith.cmpi sge, %11, %26 : vector<6x6xi32>
    %c6_i32 = arith.constant 6 : i32
    %28 = vector.broadcast %c6_i32 : i32 to vector<6x6xi32>
    %29 = arith.cmpi slt, %11, %28 : vector<6x6xi32>
    %30 = arith.andi %27, %29 : vector<6x6xi1>
    %c3_i32_9 = arith.constant 3 : i32
    %31 = vector.broadcast %c3_i32_9 : i32 to vector<6x6xi32>
    %32 = arith.cmpi sge, %12, %31 : vector<6x6xi32>
    %c6_i32_10 = arith.constant 6 : i32
    %33 = vector.broadcast %c6_i32_10 : i32 to vector<6x6xi32>
    %34 = arith.cmpi slt, %12, %33 : vector<6x6xi32>
    %35 = arith.andi %32, %34 : vector<6x6xi1>
    %36 = arith.andi %30, %35 : vector<6x6xi1>
    %37 = arith.ori %25, %36 : vector<6x6xi1>
    %cst_11 = arith.constant 0.000000e+00 : f32
    %38 = vector.broadcast %cst_11 : f32 to vector<6x32xf32>
    %c0_i32_12 = arith.constant 0 : i32
    %39 = vector.broadcast %c0_i32_12 : i32 to vector<6x32xi32>
    %40 = arith.cmpi sge, %10, %39 : vector<6x32xi32>
    %c8_i32 = arith.constant 8 : i32
    %41 = vector.broadcast %c8_i32 : i32 to vector<6x32xi32>
    %42 = arith.cmpi slt, %10, %41 : vector<6x32xi32>
    %43 = arith.andi %40, %42 : vector<6x32xi1>
    %cst_13 = arith.constant 0.000000e+00 : f32
    %44 = vector.broadcast %cst_13 : f32 to vector<6x32xf32>
    %45 = arith.select %43, %7, %44 : vector<6x32xi1>, vector<6x32xf32>
    %cst_14 = arith.constant dense<0.000000e+00> : vector<6x6xf32>
    %46 = tpu.matmul %45, %8, %cst_14 {dimension_numbers = #tpu.dot_dimension_numbers<[1], [1], [0], [0], [0, 0, 1, 0], [], []>} : vector<6x32xf32>, vector<6x32xf32>, vector<6x6xf32> -> vector<6x6xf32>
    %cst_15 = arith.constant -1.000000e+30 : f32
    %47 = vector.broadcast %cst_15 : f32 to vector<6x6xf32>
    %48 = arith.select %37, %46, %47 : vector<6x6xi1>, vector<6x6xf32>
    %cst_16 = arith.constant dense<0xFF800000> : vector<6xf32>
    %49 = vector.multi_reduction <maximumf>, %48, %cst_16 [1] : vector<6x6xf32> to vector<6xf32>
    %50 = vector.shape_cast %49 : vector<6xf32> to vector<6x1xf32>
    %51 = vector.broadcast %50 : vector<6x1xf32> to vector<6x6xf32>
    %52 = arith.subf %48, %51 : vector<6x6xf32>
    %53 = math.exp %52 : vector<6x6xf32>
    %cst_17 = arith.constant dense<0.000000e+00> : vector<6xf32>
    %54 = vector.multi_reduction <add>, %53, %cst_17 [1] : vector<6x6xf32> to vector<6xf32>
    %55 = vector.shape_cast %54 : vector<6xf32> to vector<6x1xf32>
    %56 = vector.broadcast %55 : vector<6x1xf32> to vector<6x6xf32>
    %57 = arith.divf %53, %56 : vector<6x6xf32>
    %c0_18 = arith.constant 0 : index
    %c0_19 = arith.constant 0 : index
    %c0_20 = arith.constant 0 : index
    %c0_21 = arith.constant 0 : index
    %58 = vector.load %arg13[%c0_18, %c0_19, %c0_20, %c0_21] : memref<1x4x6x6xf32, #tpu.memory_space<vmem>>, vector<1x1x6x6xf32>
    %59 = vector.shape_cast %58 : vector<1x1x6x6xf32> to vector<6x6xf32>
    %60 = vector.shape_cast %57 : vector<6x6xf32> to vector<1x1x6x6xf32>
    tpu.vector_store %arg13[%c0_18, %c0_19, %c0_20, %c0_21], %60 {strides = array<i32>} : memref<1x4x6x6xf32, #tpu.memory_space<vmem>>, vector<1x1x6x6xf32>,
    %cst_22 = arith.constant 0.000000e+00 : f32
    %61 = vector.broadcast %cst_22 : f32 to vector<6x32xf32>
    %62 = arith.select %43, %9, %61 : vector<6x32xi1>, vector<6x32xf32>
    %cst_23 = arith.constant dense<0.000000e+00> : vector<6x32xf32>
    %63 = tpu.matmul %57, %62, %cst_23 {dimension_numbers = #tpu.dot_dimension_numbers<[1], [0], [0], [1], [0, 0, 1, 1], [], []>} : vector<6x6xf32>, vector<6x32xf32>, vector<6x32xf32> -> vector<6x32xf32>
    %64 = arith.addf %38, %63 : vector<6x32xf32>
    %c8_i32_24 = arith.constant 8 : i32
    %65 = vector.broadcast %c8_i32_24 : i32 to vector<6x32xi32>
    %66 = arith.cmpi sge, %10, %65 : vector<6x32xi32>
    %c16_i32 = arith.constant 16 : i32
    %67 = vector.broadcast %c16_i32 : i32 to vector<6x32xi32>
    %68 = arith.cmpi slt, %10, %67 : vector<6x32xi32>
    %69 = arith.andi %66, %68 : vector<6x32xi1>
    %cst_25 = arith.constant 0.000000e+00 : f32
    %70 = vector.broadcast %cst_25 : f32 to vector<6x32xf32>
    %71 = arith.select %69, %7, %70 : vector<6x32xi1>, vector<6x32xf32>
    %cst_26 = arith.constant dense<0.000000e+00> : vector<6x6xf32>
    %72 = tpu.matmul %71, %8, %cst_26 {dimension_numbers = #tpu.dot_dimension_numbers<[1], [1], [0], [0], [0, 0, 1, 0], [], []>} : vector<6x32xf32>, vector<6x32xf32>, vector<6x6xf32> -> vector<6x6xf32>
    %cst_27 = arith.constant -1.000000e+30 : f32
    %73 = vector.broadcast %cst_27 : f32 to vector<6x6xf32>
    %74 = arith.select %37, %72, %73 : vector<6x6xi1>, vector<6x6xf32>
    %cst_28 = arith.constant dense<0xFF800000> : vector<6xf32>
    %75 = vector.multi_reduction <maximumf>, %74, %cst_28 [1] : vector<6x6xf32> to vector<6xf32>
    %76 = vector.shape_cast %75 : vector<6xf32> to vector<6x1xf32>
    %77 = vector.broadcast %76 : vector<6x1xf32> to vector<6x6xf32>
    %78 = arith.subf %74, %77 : vector<6x6xf32>
    %79 = math.exp %78 : vector<6x6xf32>
    %cst_29 = arith.constant dense<0.000000e+00> : vector<6xf32>
    %80 = vector.multi_reduction <add>, %79, %cst_29 [1] : vector<6x6xf32> to vector<6xf32>
    %81 = vector.shape_cast %80 : vector<6xf32> to vector<6x1xf32>
    %82 = vector.broadcast %81 : vector<6x1xf32> to vector<6x6xf32>
    %83 = arith.divf %79, %82 : vector<6x6xf32>
    %c0_30 = arith.constant 0 : index
    %c1 = arith.constant 1 : index
    %c0_31 = arith.constant 0 : index
    %c0_32 = arith.constant 0 : index
    %84 = vector.load %arg13[%c0_30, %c1, %c0_31, %c0_32] : memref<1x4x6x6xf32, #tpu.memory_space<vmem>>, vector<1x1x6x6xf32>
    %85 = vector.shape_cast %84 : vector<1x1x6x6xf32> to vector<6x6xf32>
    %86 = vector.shape_cast %83 : vector<6x6xf32> to vector<1x1x6x6xf32>
    tpu.vector_store %arg13[%c0_30, %c1, %c0_31, %c0_32], %86 {strides = array<i32>} : memref<1x4x6x6xf32, #tpu.memory_space<vmem>>, vector<1x1x6x6xf32>,
    %cst_33 = arith.constant 0.000000e+00 : f32
    %87 = vector.broadcast %cst_33 : f32 to vector<6x32xf32>
    %88 = arith.select %69, %9, %87 : vector<6x32xi1>, vector<6x32xf32>
    %cst_34 = arith.constant dense<0.000000e+00> : vector<6x32xf32>
    %89 = tpu.matmul %83, %88, %cst_34 {dimension_numbers = #tpu.dot_dimension_numbers<[1], [0], [0], [1], [0, 0, 1, 1], [], []>} : vector<6x6xf32>, vector<6x32xf32>, vector<6x32xf32> -> vector<6x32xf32>
    %90 = arith.addf %64, %89 : vector<6x32xf32>
    %c16_i32_35 = arith.constant 16 : i32
    %91 = vector.broadcast %c16_i32_35 : i32 to vector<6x32xi32>
    %92 = arith.cmpi sge, %10, %91 : vector<6x32xi32>
    %c24_i32 = arith.constant 24 : i32
    %93 = vector.broadcast %c24_i32 : i32 to vector<6x32xi32>
    %94 = arith.cmpi slt, %10, %93 : vector<6x32xi32>
    %95 = arith.andi %92, %94 : vector<6x32xi1>
    %cst_36 = arith.constant 0.000000e+00 : f32
    %96 = vector.broadcast %cst_36 : f32 to vector<6x32xf32>
    %97 = arith.select %95, %7, %96 : vector<6x32xi1>, vector<6x32xf32>
    %cst_37 = arith.constant dense<0.000000e+00> : vector<6x6xf32>
    %98 = tpu.matmul %97, %8, %cst_37 {dimension_numbers = #tpu.dot_dimension_numbers<[1], [1], [0], [0], [0, 0, 1, 0], [], []>} : vector<6x32xf32>, vector<6x32xf32>, vector<6x6xf32> -> vector<6x6xf32>
    %cst_38 = arith.constant -1.000000e+30 : f32
    %99 = vector.broadcast %cst_38 : f32 to vector<6x6xf32>
    %100 = arith.select %37, %98, %99 : vector<6x6xi1>, vector<6x6xf32>
    %cst_39 = arith.constant dense<0xFF800000> : vector<6xf32>
    %101 = vector.multi_reduction <maximumf>, %100, %cst_39 [1] : vector<6x6xf32> to vector<6xf32>
    %102 = vector.shape_cast %101 : vector<6xf32> to vector<6x1xf32>
    %103 = vector.broadcast %102 : vector<6x1xf32> to vector<6x6xf32>
    %104 = arith.subf %100, %103 : vector<6x6xf32>
    %105 = math.exp %104 : vector<6x6xf32>
    %cst_40 = arith.constant dense<0.000000e+00> : vector<6xf32>
    %106 = vector.multi_reduction <add>, %105, %cst_40 [1] : vector<6x6xf32> to vector<6xf32>
    %107 = vector.shape_cast %106 : vector<6xf32> to vector<6x1xf32>
    %108 = vector.broadcast %107 : vector<6x1xf32> to vector<6x6xf32>
    %109 = arith.divf %105, %108 : vector<6x6xf32>
    %c0_41 = arith.constant 0 : index
    %c2 = arith.constant 2 : index
    %c0_42 = arith.constant 0 : index
    %c0_43 = arith.constant 0 : index
    %110 = vector.load %arg13[%c0_41, %c2, %c0_42, %c0_43] : memref<1x4x6x6xf32, #tpu.memory_space<vmem>>, vector<1x1x6x6xf32>
    %111 = vector.shape_cast %110 : vector<1x1x6x6xf32> to vector<6x6xf32>
    %112 = vector.shape_cast %109 : vector<6x6xf32> to vector<1x1x6x6xf32>
    tpu.vector_store %arg13[%c0_41, %c2, %c0_42, %c0_43], %112 {strides = array<i32>} : memref<1x4x6x6xf32, #tpu.memory_space<vmem>>, vector<1x1x6x6xf32>,
    %cst_44 = arith.constant 0.000000e+00 : f32
    %113 = vector.broadcast %cst_44 : f32 to vector<6x32xf32>
    %114 = arith.select %95, %9, %113 : vector<6x32xi1>, vector<6x32xf32>
    %cst_45 = arith.constant dense<0.000000e+00> : vector<6x32xf32>
    %115 = tpu.matmul %109, %114, %cst_45 {dimension_numbers = #tpu.dot_dimension_numbers<[1], [0], [0], [1], [0, 0, 1, 1], [], []>} : vector<6x6xf32>, vector<6x32xf32>, vector<6x32xf32> -> vector<6x32xf32>
    %116 = arith.addf %90, %115 : vector<6x32xf32>
    %c24_i32_46 = arith.constant 24 : i32
    %117 = vector.broadcast %c24_i32_46 : i32 to vector<6x32xi32>
    %118 = arith.cmpi sge, %10, %117 : vector<6x32xi32>
    %c32_i32 = arith.constant 32 : i32
    %119 = vector.broadcast %c32_i32 : i32 to vector<6x32xi32>
    %120 = arith.cmpi slt, %10, %119 : vector<6x32xi32>
    %121 = arith.andi %118, %120 : vector<6x32xi1>
    %cst_47 = arith.constant 0.000000e+00 : f32
    %122 = vector.broadcast %cst_47 : f32 to vector<6x32xf32>
    %123 = arith.select %121, %7, %122 : vector<6x32xi1>, vector<6x32xf32>
    %cst_48 = arith.constant dense<0.000000e+00> : vector<6x6xf32>
    %124 = tpu.matmul %123, %8, %cst_48 {dimension_numbers = #tpu.dot_dimension_numbers<[1], [1], [0], [0], [0, 0, 1, 0], [], []>} : vector<6x32xf32>, vector<6x32xf32>, vector<6x6xf32> -> vector<6x6xf32>
    %cst_49 = arith.constant -1.000000e+30 : f32
    %125 = vector.broadcast %cst_49 : f32 to vector<6x6xf32>
    %126 = arith.select %37, %124, %125 : vector<6x6xi1>, vector<6x6xf32>
    %cst_50 = arith.constant dense<0xFF800000> : vector<6xf32>
    %127 = vector.multi_reduction <maximumf>, %126, %cst_50 [1] : vector<6x6xf32> to vector<6xf32>
    %128 = vector.shape_cast %127 : vector<6xf32> to vector<6x1xf32>
    %129 = vector.broadcast %128 : vector<6x1xf32> to vector<6x6xf32>
    %130 = arith.subf %126, %129 : vector<6x6xf32>
    %131 = math.exp %130 : vector<6x6xf32>
    %cst_51 = arith.constant dense<0.000000e+00> : vector<6xf32>
    %132 = vector.multi_reduction <add>, %131, %cst_51 [1] : vector<6x6xf32> to vector<6xf32>
    %133 = vector.shape_cast %132 : vector<6xf32> to vector<6x1xf32>
    %134 = vector.broadcast %133 : vector<6x1xf32> to vector<6x6xf32>
    %135 = arith.divf %131, %134 : vector<6x6xf32>
    %c0_52 = arith.constant 0 : index
    %c3 = arith.constant 3 : index
    %c0_53 = arith.constant 0 : index
    %c0_54 = arith.constant 0 : index
    %136 = vector.load %arg13[%c0_52, %c3, %c0_53, %c0_54] : memref<1x4x6x6xf32, #tpu.memory_space<vmem>>, vector<1x1x6x6xf32>
    %137 = vector.shape_cast %136 : vector<1x1x6x6xf32> to vector<6x6xf32>
    %138 = vector.shape_cast %135 : vector<6x6xf32> to vector<1x1x6x6xf32>
    tpu.vector_store %arg13[%c0_52, %c3, %c0_53, %c0_54], %138 {strides = array<i32>} : memref<1x4x6x6xf32, #tpu.memory_space<vmem>>, vector<1x1x6x6xf32>,
    %cst_55 = arith.constant 0.000000e+00 : f32
    %139 = vector.broadcast %cst_55 : f32 to vector<6x32xf32>
    %140 = arith.select %121, %9, %139 : vector<6x32xi1>, vector<6x32xf32>
    %cst_56 = arith.constant dense<0.000000e+00> : vector<6x32xf32>
    %141 = tpu.matmul %135, %140, %cst_56 {dimension_numbers = #tpu.dot_dimension_numbers<[1], [0], [0], [1], [0, 0, 1, 1], [], []>} : vector<6x6xf32>, vector<6x32xf32>, vector<6x32xf32> -> vector<6x32xf32>
    %142 = arith.addf %116, %141 : vector<6x32xf32>
    %c0_57 = arith.constant 0 : index
    %c0_58 = arith.constant 0 : index
    %143 = vector.load %arg5[%c0_57, %c0_58] : memref<6x32xf32, #tpu.memory_space<vmem>>, vector<1x32xf32>
    %c1_59 = arith.constant 1 : index
    %c0_60 = arith.constant 0 : index
    %144 = vector.load %arg5[%c1_59, %c0_60] : memref<6x32xf32, #tpu.memory_space<vmem>>, vector<1x32xf32>
    %c2_61 = arith.constant 2 : index
    %c0_62 = arith.constant 0 : index
    %145 = vector.load %arg5[%c2_61, %c0_62] : memref<6x32xf32, #tpu.memory_space<vmem>>, vector<1x32xf32>
    %c3_63 = arith.constant 3 : index
    %c0_64 = arith.constant 0 : index
    %146 = vector.load %arg5[%c3_63, %c0_64] : memref<6x32xf32, #tpu.memory_space<vmem>>, vector<1x32xf32>
    %c4 = arith.constant 4 : index
    %c0_65 = arith.constant 0 : index
    %147 = vector.load %arg5[%c4, %c0_65] : memref<6x32xf32, #tpu.memory_space<vmem>>, vector<1x32xf32>
    %c5 = arith.constant 5 : index
    %c0_66 = arith.constant 0 : index
    %148 = vector.load %arg5[%c5, %c0_66] : memref<6x32xf32, #tpu.memory_space<vmem>>, vector<1x32xf32>
    %c0_67 = arith.constant 0 : index
    %c0_68 = arith.constant 0 : index
    %149 = vector.load %arg4[%c0_67, %c0_68] : memref<32x32xf32, #tpu.memory_space<vmem>>, vector<32x32xf32>
    %cst_69 = arith.constant dense<0.000000e+00> : vector<6x32xf32>
    %150 = tpu.matmul %142, %149, %cst_69 {dimension_numbers = #tpu.dot_dimension_numbers<[1], [0], [0], [1], [0, 0, 1, 1], [], []>} : vector<6x32xf32>, vector<32x32xf32>, vector<6x32xf32> -> vector<6x32xf32>
    %151 = vector.broadcast %143 : vector<1x32xf32> to vector<6x32xf32>
    %152 = arith.addf %150, %151 : vector<6x32xf32>
    %153 = arith.addf %152, %1 : vector<6x32xf32>
    %cst_70 = arith.constant dense<0.000000e+00> : vector<6xf32>
    %154 = vector.multi_reduction <add>, %153, %cst_70 [1] : vector<6x32xf32> to vector<6xf32>
    %155 = vector.shape_cast %154 : vector<6xf32> to vector<6x1xf32>
    %cst_71 = arith.constant 3.200000e+01 : f32
    %156 = vector.broadcast %cst_71 : f32 to vector<6x1xf32>
    %157 = arith.divf %155, %156 : vector<6x1xf32>
    %158 = vector.broadcast %157 : vector<6x1xf32> to vector<6x32xf32>
    %159 = arith.subf %153, %158 : vector<6x32xf32>
    %160 = arith.mulf %159, %159 : vector<6x32xf32>
    %cst_72 = arith.constant dense<0.000000e+00> : vector<6xf32>
    %161 = vector.multi_reduction <add>, %160, %cst_72 [1] : vector<6x32xf32> to vector<6xf32>
    %162 = vector.shape_cast %161 : vector<6xf32> to vector<6x1xf32>
    %cst_73 = arith.constant 3.200000e+01 : f32
    %163 = vector.broadcast %cst_73 : f32 to vector<6x1xf32>
    %164 = arith.divf %162, %163 : vector<6x1xf32>
    %165 = vector.broadcast %157 : vector<6x1xf32> to vector<6x32xf32>
    %166 = arith.subf %153, %165 : vector<6x32xf32>
    %cst_74 = arith.constant 9.99999996E-13 : f32
    %167 = vector.broadcast %cst_74 : f32 to vector<6x1xf32>
    %168 = arith.addf %164, %167 : vector<6x1xf32>
    %169 = math.rsqrt %168 : vector<6x1xf32>
    %170 = vector.broadcast %169 : vector<6x1xf32> to vector<6x32xf32>
    %171 = arith.mulf %166, %170 : vector<6x32xf32>
    %172 = vector.broadcast %144 : vector<1x32xf32> to vector<6x32xf32>
    %173 = arith.mulf %171, %172 : vector<6x32xf32>
    %174 = vector.broadcast %145 : vector<1x32xf32> to vector<6x32xf32>
    %175 = arith.addf %173, %174 : vector<6x32xf32>
    %c0_75 = arith.constant 0 : index
    %c0_76 = arith.constant 0 : index
    %176 = vector.load %arg6[%c0_75, %c0_76] : memref<32x64xf32, #tpu.memory_space<vmem>>, vector<32x64xf32>
    %cst_77 = arith.constant dense<0.000000e+00> : vector<6x64xf32>
    %177 = tpu.matmul %175, %176, %cst_77 {dimension_numbers = #tpu.dot_dimension_numbers<[1], [0], [0], [1], [0, 0, 1, 1], [], []>} : vector<6x32xf32>, vector<32x64xf32>, vector<6x64xf32> -> vector<6x64xf32>
    %c0_78 = arith.constant 0 : index
    %c0_79 = arith.constant 0 : index
    %178 = vector.load %arg7[%c0_78, %c0_79] : memref<1x64xf32, #tpu.memory_space<vmem>>, vector<1x64xf32>
    %179 = vector.broadcast %178 : vector<1x64xf32> to vector<6x64xf32>
    %180 = arith.addf %177, %179 : vector<6x64xf32>
    %cst_80 = arith.constant 5.000000e-01 : f32
    %181 = vector.broadcast %cst_80 : f32 to vector<6x64xf32>
    %182 = arith.mulf %181, %180 : vector<6x64xf32>
    %cst_81 = arith.constant 4.471500e-02 : f32
    %183 = vector.broadcast %cst_81 : f32 to vector<6x64xf32>
    %184 = arith.mulf %183, %180 : vector<6x64xf32>
    %185 = arith.mulf %184, %180 : vector<6x64xf32>
    %186 = arith.mulf %185, %180 : vector<6x64xf32>
    %187 = arith.addf %180, %186 : vector<6x64xf32>
    %cst_82 = arith.constant 0.797884583 : f32
    %188 = vector.broadcast %cst_82 : f32 to vector<6x64xf32>
    %189 = arith.mulf %188, %187 : vector<6x64xf32>
    %190 = math.tanh %189 : vector<6x64xf32>
    %cst_83 = arith.constant 1.000000e+00 : f32
    %191 = vector.broadcast %cst_83 : f32 to vector<6x64xf32>
    %192 = arith.addf %191, %190 : vector<6x64xf32>
    %193 = arith.mulf %182, %192 : vector<6x64xf32>
    %c0_84 = arith.constant 0 : index
    %c0_85 = arith.constant 0 : index
    %194 = vector.load %arg8[%c0_84, %c0_85] : memref<64x32xf32, #tpu.memory_space<vmem>>, vector<64x32xf32>
    %cst_86 = arith.constant dense<0.000000e+00> : vector<6x32xf32>
    %195 = tpu.matmul %193, %194, %cst_86 {dimension_numbers = #tpu.dot_dimension_numbers<[1], [0], [0], [1], [0, 0, 1, 1], [], []>} : vector<6x64xf32>, vector<64x32xf32>, vector<6x32xf32> -> vector<6x32xf32>
    %196 = vector.broadcast %146 : vector<1x32xf32> to vector<6x32xf32>
    %197 = arith.addf %195, %196 : vector<6x32xf32>
    %c0_87 = arith.constant 0 : index
    %c0_88 = arith.constant 0 : index
    %198 = vector.load %arg9[%c0_87, %c0_88] : memref<6x7xf32, #tpu.memory_space<vmem>>, vector<6x7xf32>
    %c0_89 = arith.constant 0 : index
    %c0_90 = arith.constant 0 : index
    %199 = vector.load %arg10[%c0_89, %c0_90] : memref<6x7xf32, #tpu.memory_space<vmem>>, vector<6x7xf32>
    %200 = vector.extract_strided_slice %198 {offsets = [0, 0], sizes = [6, 6], strides = [1, 1]} : vector<6x7xf32> to vector<6x6xf32>
    %201 = vector.extract_strided_slice %198 {offsets = [0, 6], sizes = [6, 1], strides = [1, 1]} : vector<6x7xf32> to vector<6x1xf32>
    %202 = vector.extract_strided_slice %199 {offsets = [0, 0], sizes = [6, 6], strides = [1, 1]} : vector<6x7xf32> to vector<6x6xf32>
    %203 = vector.extract_strided_slice %199 {offsets = [0, 6], sizes = [6, 1], strides = [1, 1]} : vector<6x7xf32> to vector<6x1xf32>
    %cst_91 = arith.constant dense<0.000000e+00> : vector<6x32xf32>
    %204 = tpu.matmul %200, %197, %cst_91 {dimension_numbers = #tpu.dot_dimension_numbers<[1], [0], [0], [1], [0, 0, 1, 1], [], []>} : vector<6x6xf32>, vector<6x32xf32>, vector<6x32xf32> -> vector<6x32xf32>
    %205 = vector.broadcast %201 : vector<6x1xf32> to vector<6x32xf32>
    %206 = arith.addf %204, %205 : vector<6x32xf32>
    %cst_92 = arith.constant dense<0.000000e+00> : vector<6x32xf32>
    %207 = tpu.matmul %202, %197, %cst_92 {dimension_numbers = #tpu.dot_dimension_numbers<[1], [0], [0], [1], [0, 0, 1, 1], [], []>} : vector<6x6xf32>, vector<6x32xf32>, vector<6x32xf32> -> vector<6x32xf32>
    %208 = vector.broadcast %203 : vector<6x1xf32> to vector<6x32xf32>
    %209 = arith.addf %207, %208 : vector<6x32xf32>
    %cst_93 = arith.constant 0.000000e+00 : f32
    %210 = vector.broadcast %cst_93 : f32 to vector<6x32xf32>
    %211 = arith.subf %210, %209 : vector<6x32xf32>
    %212 = math.exp %211 : vector<6x32xf32>
    %cst_94 = arith.constant 1.000000e+00 : f32
    %213 = vector.broadcast %cst_94 : f32 to vector<6x32xf32>
    %214 = arith.addf %213, %212 : vector<6x32xf32>
    %cst_95 = arith.constant 1.000000e+00 : f32
    %215 = vector.broadcast %cst_95 : f32 to vector<6x32xf32>
    %216 = arith.divf %215, %214 : vector<6x32xf32>
    %217 = arith.mulf %206, %216 : vector<6x32xf32>
    %c0_96 = arith.constant 0 : index
    %c0_97 = arith.constant 0 : index
    %218 = vector.load %arg11[%c0_96, %c0_97] : memref<6x42xf32, #tpu.memory_space<vmem>>, vector<6x42xf32>
    %219 = vector.extract_strided_slice %218 {offsets = [0, 0], sizes = [6, 31], strides = [1, 1]} : vector<6x42xf32> to vector<6x31xf32>
    %220 = vector.extract_strided_slice %218 {offsets = [0, 31], sizes = [6, 1], strides = [1, 1]} : vector<6x42xf32> to vector<6x1xf32>
    %221 = vector.extract_strided_slice %218 {offsets = [0, 32], sizes = [6, 1], strides = [1, 1]} : vector<6x42xf32> to vector<6x1xf32>
    %222 = vector.extract_strided_slice %218 {offsets = [0, 33], sizes = [6, 1], strides = [1, 1]} : vector<6x42xf32> to vector<6x1xf32>
    %223 = vector.extract_strided_slice %218 {offsets = [0, 34], sizes = [6, 1], strides = [1, 1]} : vector<6x42xf32> to vector<6x1xf32>
    %224 = vector.extract_strided_slice %218 {offsets = [0, 35], sizes = [6, 6], strides = [1, 1]} : vector<6x42xf32> to vector<6x6xf32>
    %225 = vector.extract_strided_slice %218 {offsets = [0, 41], sizes = [6, 1], strides = [1, 1]} : vector<6x42xf32> to vector<6x1xf32>
    %cst_98 = arith.constant 0.000000e+00 : f32
    %226 = vector.broadcast %cst_98 : f32 to vector<6x15xf32>
    %227 = tpu.concatenate %226, %217, %226 in 1 : vector<6x15xf32>, vector<6x32xf32>, vector<6x15xf32> -> vector<6x62xf32>
    %cst_99 = arith.constant 0.000000e+00 : f32
    %228 = vector.broadcast %cst_99 : f32 to vector<6x32xf32>
    %229 = vector.extract_strided_slice %227 {offsets = [0, 0], sizes = [6, 32], strides = [1, 1]} : vector<6x62xf32> to vector<6x32xf32>
    %230 = vector.extract_strided_slice %219 {offsets = [0, 0], sizes = [6, 1], strides = [1, 1]} : vector<6x31xf32> to vector<6x1xf32>
    %231 = vector.broadcast %230 : vector<6x1xf32> to vector<6x32xf32>
    %232 = arith.mulf %229, %231 : vector<6x32xf32>
    %233 = arith.addf %228, %232 : vector<6x32xf32>
    %234 = vector.extract_strided_slice %227 {offsets = [0, 1], sizes = [6, 32], strides = [1, 1]} : vector<6x62xf32> to vector<6x32xf32>
    %235 = vector.extract_strided_slice %219 {offsets = [0, 1], sizes = [6, 1], strides = [1, 1]} : vector<6x31xf32> to vector<6x1xf32>
    %236 = vector.broadcast %235 : vector<6x1xf32> to vector<6x32xf32>
    %237 = arith.mulf %234, %236 : vector<6x32xf32>
    %238 = arith.addf %233, %237 : vector<6x32xf32>
    %239 = vector.extract_strided_slice %227 {offsets = [0, 2], sizes = [6, 32], strides = [1, 1]} : vector<6x62xf32> to vector<6x32xf32>
    %240 = vector.extract_strided_slice %219 {offsets = [0, 2], sizes = [6, 1], strides = [1, 1]} : vector<6x31xf32> to vector<6x1xf32>
    %241 = vector.broadcast %240 : vector<6x1xf32> to vector<6x32xf32>
    %242 = arith.mulf %239, %241 : vector<6x32xf32>
    %243 = arith.addf %238, %242 : vector<6x32xf32>
    %244 = vector.extract_strided_slice %227 {offsets = [0, 3], sizes = [6, 32], strides = [1, 1]} : vector<6x62xf32> to vector<6x32xf32>
    %245 = vector.extract_strided_slice %219 {offsets = [0, 3], sizes = [6, 1], strides = [1, 1]} : vector<6x31xf32> to vector<6x1xf32>
    %246 = vector.broadcast %245 : vector<6x1xf32> to vector<6x32xf32>
    %247 = arith.mulf %244, %246 : vector<6x32xf32>
    %248 = arith.addf %243, %247 : vector<6x32xf32>
    %249 = vector.extract_strided_slice %227 {offsets = [0, 4], sizes = [6, 32], strides = [1, 1]} : vector<6x62xf32> to vector<6x32xf32>
    %250 = vector.extract_strided_slice %219 {offsets = [0, 4], sizes = [6, 1], strides = [1, 1]} : vector<6x31xf32> to vector<6x1xf32>
    %251 = vector.broadcast %250 : vector<6x1xf32> to vector<6x32xf32>
    %252 = arith.mulf %249, %251 : vector<6x32xf32>
    %253 = arith.addf %248, %252 : vector<6x32xf32>
    %254 = vector.extract_strided_slice %227 {offsets = [0, 5], sizes = [6, 32], strides = [1, 1]} : vector<6x62xf32> to vector<6x32xf32>
    %255 = vector.extract_strided_slice %219 {offsets = [0, 5], sizes = [6, 1], strides = [1, 1]} : vector<6x31xf32> to vector<6x1xf32>
    %256 = vector.broadcast %255 : vector<6x1xf32> to vector<6x32xf32>
    %257 = arith.mulf %254, %256 : vector<6x32xf32>
    %258 = arith.addf %253, %257 : vector<6x32xf32>
    %259 = vector.extract_strided_slice %227 {offsets = [0, 6], sizes = [6, 32], strides = [1, 1]} : vector<6x62xf32> to vector<6x32xf32>
    %260 = vector.extract_strided_slice %219 {offsets = [0, 6], sizes = [6, 1], strides = [1, 1]} : vector<6x31xf32> to vector<6x1xf32>
    %261 = vector.broadcast %260 : vector<6x1xf32> to vector<6x32xf32>
    %262 = arith.mulf %259, %261 : vector<6x32xf32>
    %263 = arith.addf %258, %262 : vector<6x32xf32>
    %264 = vector.extract_strided_slice %227 {offsets = [0, 7], sizes = [6, 32], strides = [1, 1]} : vector<6x62xf32> to vector<6x32xf32>
    %265 = vector.extract_strided_slice %219 {offsets = [0, 7], sizes = [6, 1], strides = [1, 1]} : vector<6x31xf32> to vector<6x1xf32>
    %266 = vector.broadcast %265 : vector<6x1xf32> to vector<6x32xf32>
    %267 = arith.mulf %264, %266 : vector<6x32xf32>
    %268 = arith.addf %263, %267 : vector<6x32xf32>
    %269 = vector.extract_strided_slice %227 {offsets = [0, 8], sizes = [6, 32], strides = [1, 1]} : vector<6x62xf32> to vector<6x32xf32>
    %270 = vector.extract_strided_slice %219 {offsets = [0, 8], sizes = [6, 1], strides = [1, 1]} : vector<6x31xf32> to vector<6x1xf32>
    %271 = vector.broadcast %270 : vector<6x1xf32> to vector<6x32xf32>
    %272 = arith.mulf %269, %271 : vector<6x32xf32>
    %273 = arith.addf %268, %272 : vector<6x32xf32>
    %274 = vector.extract_strided_slice %227 {offsets = [0, 9], sizes = [6, 32], strides = [1, 1]} : vector<6x62xf32> to vector<6x32xf32>
    %275 = vector.extract_strided_slice %219 {offsets = [0, 9], sizes = [6, 1], strides = [1, 1]} : vector<6x31xf32> to vector<6x1xf32>
    %276 = vector.broadcast %275 : vector<6x1xf32> to vector<6x32xf32>
    %277 = arith.mulf %274, %276 : vector<6x32xf32>
    %278 = arith.addf %273, %277 : vector<6x32xf32>
    %279 = vector.extract_strided_slice %227 {offsets = [0, 10], sizes = [6, 32], strides = [1, 1]} : vector<6x62xf32> to vector<6x32xf32>
    %280 = vector.extract_strided_slice %219 {offsets = [0, 10], sizes = [6, 1], strides = [1, 1]} : vector<6x31xf32> to vector<6x1xf32>
    %281 = vector.broadcast %280 : vector<6x1xf32> to vector<6x32xf32>
    %282 = arith.mulf %279, %281 : vector<6x32xf32>
    %283 = arith.addf %278, %282 : vector<6x32xf32>
    %284 = vector.extract_strided_slice %227 {offsets = [0, 11], sizes = [6, 32], strides = [1, 1]} : vector<6x62xf32> to vector<6x32xf32>
    %285 = vector.extract_strided_slice %219 {offsets = [0, 11], sizes = [6, 1], strides = [1, 1]} : vector<6x31xf32> to vector<6x1xf32>
    %286 = vector.broadcast %285 : vector<6x1xf32> to vector<6x32xf32>
    %287 = arith.mulf %284, %286 : vector<6x32xf32>
    %288 = arith.addf %283, %287 : vector<6x32xf32>
    %289 = vector.extract_strided_slice %227 {offsets = [0, 12], sizes = [6, 32], strides = [1, 1]} : vector<6x62xf32> to vector<6x32xf32>
    %290 = vector.extract_strided_slice %219 {offsets = [0, 12], sizes = [6, 1], strides = [1, 1]} : vector<6x31xf32> to vector<6x1xf32>
    %291 = vector.broadcast %290 : vector<6x1xf32> to vector<6x32xf32>
    %292 = arith.mulf %289, %291 : vector<6x32xf32>
    %293 = arith.addf %288, %292 : vector<6x32xf32>
    %294 = vector.extract_strided_slice %227 {offsets = [0, 13], sizes = [6, 32], strides = [1, 1]} : vector<6x62xf32> to vector<6x32xf32>
    %295 = vector.extract_strided_slice %219 {offsets = [0, 13], sizes = [6, 1], strides = [1, 1]} : vector<6x31xf32> to vector<6x1xf32>
    %296 = vector.broadcast %295 : vector<6x1xf32> to vector<6x32xf32>
    %297 = arith.mulf %294, %296 : vector<6x32xf32>
    %298 = arith.addf %293, %297 : vector<6x32xf32>
    %299 = vector.extract_strided_slice %227 {offsets = [0, 14], sizes = [6, 32], strides = [1, 1]} : vector<6x62xf32> to vector<6x32xf32>
    %300 = vector.extract_strided_slice %219 {offsets = [0, 14], sizes = [6, 1], strides = [1, 1]} : vector<6x31xf32> to vector<6x1xf32>
    %301 = vector.broadcast %300 : vector<6x1xf32> to vector<6x32xf32>
    %302 = arith.mulf %299, %301 : vector<6x32xf32>
    %303 = arith.addf %298, %302 : vector<6x32xf32>
    %304 = vector.extract_strided_slice %227 {offsets = [0, 15], sizes = [6, 32], strides = [1, 1]} : vector<6x62xf32> to vector<6x32xf32>
    %305 = vector.extract_strided_slice %219 {offsets = [0, 15], sizes = [6, 1], strides = [1, 1]} : vector<6x31xf32> to vector<6x1xf32>
    %306 = vector.broadcast %305 : vector<6x1xf32> to vector<6x32xf32>
    %307 = arith.mulf %304, %306 : vector<6x32xf32>
    %308 = arith.addf %303, %307 : vector<6x32xf32>
    %309 = vector.extract_strided_slice %227 {offsets = [0, 16], sizes = [6, 32], strides = [1, 1]} : vector<6x62xf32> to vector<6x32xf32>
    %310 = vector.extract_strided_slice %219 {offsets = [0, 16], sizes = [6, 1], strides = [1, 1]} : vector<6x31xf32> to vector<6x1xf32>
    %311 = vector.broadcast %310 : vector<6x1xf32> to vector<6x32xf32>
    %312 = arith.mulf %309, %311 : vector<6x32xf32>
    %313 = arith.addf %308, %312 : vector<6x32xf32>
    %314 = vector.extract_strided_slice %227 {offsets = [0, 17], sizes = [6, 32], strides = [1, 1]} : vector<6x62xf32> to vector<6x32xf32>
    %315 = vector.extract_strided_slice %219 {offsets = [0, 17], sizes = [6, 1], strides = [1, 1]} : vector<6x31xf32> to vector<6x1xf32>
    %316 = vector.broadcast %315 : vector<6x1xf32> to vector<6x32xf32>
    %317 = arith.mulf %314, %316 : vector<6x32xf32>
    %318 = arith.addf %313, %317 : vector<6x32xf32>
    %319 = vector.extract_strided_slice %227 {offsets = [0, 18], sizes = [6, 32], strides = [1, 1]} : vector<6x62xf32> to vector<6x32xf32>
    %320 = vector.extract_strided_slice %219 {offsets = [0, 18], sizes = [6, 1], strides = [1, 1]} : vector<6x31xf32> to vector<6x1xf32>
    %321 = vector.broadcast %320 : vector<6x1xf32> to vector<6x32xf32>
    %322 = arith.mulf %319, %321 : vector<6x32xf32>
    %323 = arith.addf %318, %322 : vector<6x32xf32>
    %324 = vector.extract_strided_slice %227 {offsets = [0, 19], sizes = [6, 32], strides = [1, 1]} : vector<6x62xf32> to vector<6x32xf32>
    %325 = vector.extract_strided_slice %219 {offsets = [0, 19], sizes = [6, 1], strides = [1, 1]} : vector<6x31xf32> to vector<6x1xf32>
    %326 = vector.broadcast %325 : vector<6x1xf32> to vector<6x32xf32>
    %327 = arith.mulf %324, %326 : vector<6x32xf32>
    %328 = arith.addf %323, %327 : vector<6x32xf32>
    %329 = vector.extract_strided_slice %227 {offsets = [0, 20], sizes = [6, 32], strides = [1, 1]} : vector<6x62xf32> to vector<6x32xf32>
    %330 = vector.extract_strided_slice %219 {offsets = [0, 20], sizes = [6, 1], strides = [1, 1]} : vector<6x31xf32> to vector<6x1xf32>
    %331 = vector.broadcast %330 : vector<6x1xf32> to vector<6x32xf32>
    %332 = arith.mulf %329, %331 : vector<6x32xf32>
    %333 = arith.addf %328, %332 : vector<6x32xf32>
    %334 = vector.extract_strided_slice %227 {offsets = [0, 21], sizes = [6, 32], strides = [1, 1]} : vector<6x62xf32> to vector<6x32xf32>
    %335 = vector.extract_strided_slice %219 {offsets = [0, 21], sizes = [6, 1], strides = [1, 1]} : vector<6x31xf32> to vector<6x1xf32>
    %336 = vector.broadcast %335 : vector<6x1xf32> to vector<6x32xf32>
    %337 = arith.mulf %334, %336 : vector<6x32xf32>
    %338 = arith.addf %333, %337 : vector<6x32xf32>
    %339 = vector.extract_strided_slice %227 {offsets = [0, 22], sizes = [6, 32], strides = [1, 1]} : vector<6x62xf32> to vector<6x32xf32>
    %340 = vector.extract_strided_slice %219 {offsets = [0, 22], sizes = [6, 1], strides = [1, 1]} : vector<6x31xf32> to vector<6x1xf32>
    %341 = vector.broadcast %340 : vector<6x1xf32> to vector<6x32xf32>
    %342 = arith.mulf %339, %341 : vector<6x32xf32>
    %343 = arith.addf %338, %342 : vector<6x32xf32>
    %344 = vector.extract_strided_slice %227 {offsets = [0, 23], sizes = [6, 32], strides = [1, 1]} : vector<6x62xf32> to vector<6x32xf32>
    %345 = vector.extract_strided_slice %219 {offsets = [0, 23], sizes = [6, 1], strides = [1, 1]} : vector<6x31xf32> to vector<6x1xf32>
    %346 = vector.broadcast %345 : vector<6x1xf32> to vector<6x32xf32>
    %347 = arith.mulf %344, %346 : vector<6x32xf32>
    %348 = arith.addf %343, %347 : vector<6x32xf32>
    %349 = vector.extract_strided_slice %227 {offsets = [0, 24], sizes = [6, 32], strides = [1, 1]} : vector<6x62xf32> to vector<6x32xf32>
    %350 = vector.extract_strided_slice %219 {offsets = [0, 24], sizes = [6, 1], strides = [1, 1]} : vector<6x31xf32> to vector<6x1xf32>
    %351 = vector.broadcast %350 : vector<6x1xf32> to vector<6x32xf32>
    %352 = arith.mulf %349, %351 : vector<6x32xf32>
    %353 = arith.addf %348, %352 : vector<6x32xf32>
    %354 = vector.extract_strided_slice %227 {offsets = [0, 25], sizes = [6, 32], strides = [1, 1]} : vector<6x62xf32> to vector<6x32xf32>
    %355 = vector.extract_strided_slice %219 {offsets = [0, 25], sizes = [6, 1], strides = [1, 1]} : vector<6x31xf32> to vector<6x1xf32>
    %356 = vector.broadcast %355 : vector<6x1xf32> to vector<6x32xf32>
    %357 = arith.mulf %354, %356 : vector<6x32xf32>
    %358 = arith.addf %353, %357 : vector<6x32xf32>
    %359 = vector.extract_strided_slice %227 {offsets = [0, 26], sizes = [6, 32], strides = [1, 1]} : vector<6x62xf32> to vector<6x32xf32>
    %360 = vector.extract_strided_slice %219 {offsets = [0, 26], sizes = [6, 1], strides = [1, 1]} : vector<6x31xf32> to vector<6x1xf32>
    %361 = vector.broadcast %360 : vector<6x1xf32> to vector<6x32xf32>
    %362 = arith.mulf %359, %361 : vector<6x32xf32>
    %363 = arith.addf %358, %362 : vector<6x32xf32>
    %364 = vector.extract_strided_slice %227 {offsets = [0, 27], sizes = [6, 32], strides = [1, 1]} : vector<6x62xf32> to vector<6x32xf32>
    %365 = vector.extract_strided_slice %219 {offsets = [0, 27], sizes = [6, 1], strides = [1, 1]} : vector<6x31xf32> to vector<6x1xf32>
    %366 = vector.broadcast %365 : vector<6x1xf32> to vector<6x32xf32>
    %367 = arith.mulf %364, %366 : vector<6x32xf32>
    %368 = arith.addf %363, %367 : vector<6x32xf32>
    %369 = vector.extract_strided_slice %227 {offsets = [0, 28], sizes = [6, 32], strides = [1, 1]} : vector<6x62xf32> to vector<6x32xf32>
    %370 = vector.extract_strided_slice %219 {offsets = [0, 28], sizes = [6, 1], strides = [1, 1]} : vector<6x31xf32> to vector<6x1xf32>
    %371 = vector.broadcast %370 : vector<6x1xf32> to vector<6x32xf32>
    %372 = arith.mulf %369, %371 : vector<6x32xf32>
    %373 = arith.addf %368, %372 : vector<6x32xf32>
    %374 = vector.extract_strided_slice %227 {offsets = [0, 29], sizes = [6, 32], strides = [1, 1]} : vector<6x62xf32> to vector<6x32xf32>
    %375 = vector.extract_strided_slice %219 {offsets = [0, 29], sizes = [6, 1], strides = [1, 1]} : vector<6x31xf32> to vector<6x1xf32>
    %376 = vector.broadcast %375 : vector<6x1xf32> to vector<6x32xf32>
    %377 = arith.mulf %374, %376 : vector<6x32xf32>
    %378 = arith.addf %373, %377 : vector<6x32xf32>
    %379 = vector.extract_strided_slice %227 {offsets = [0, 30], sizes = [6, 32], strides = [1, 1]} : vector<6x62xf32> to vector<6x32xf32>
    %380 = vector.extract_strided_slice %219 {offsets = [0, 30], sizes = [6, 1], strides = [1, 1]} : vector<6x31xf32> to vector<6x1xf32>
    %381 = vector.broadcast %380 : vector<6x1xf32> to vector<6x32xf32>
    %382 = arith.mulf %379, %381 : vector<6x32xf32>
    %383 = arith.addf %378, %382 : vector<6x32xf32>
    %384 = vector.broadcast %222 : vector<6x1xf32> to vector<6x32xf32>
    %385 = arith.subf %383, %384 : vector<6x32xf32>
    %cst_100 = arith.constant 9.99999974E-6 : f32
    %386 = vector.broadcast %cst_100 : f32 to vector<6x1xf32>
    %387 = arith.addf %223, %386 : vector<6x1xf32>
    %388 = math.rsqrt %387 : vector<6x1xf32>
    %389 = vector.broadcast %388 : vector<6x1xf32> to vector<6x32xf32>
    %390 = arith.mulf %385, %389 : vector<6x32xf32>
    %391 = vector.broadcast %220 : vector<6x1xf32> to vector<6x32xf32>
    %392 = arith.mulf %390, %391 : vector<6x32xf32>
    %393 = vector.broadcast %221 : vector<6x1xf32> to vector<6x32xf32>
    %394 = arith.addf %392, %393 : vector<6x32xf32>
    %cst_101 = arith.constant dense<0.000000e+00> : vector<6x32xf32>
    %395 = tpu.matmul %224, %394, %cst_101 {dimension_numbers = #tpu.dot_dimension_numbers<[1], [0], [0], [1], [0, 0, 1, 1], [], []>} : vector<6x6xf32>, vector<6x32xf32>, vector<6x32xf32> -> vector<6x32xf32>
    %396 = vector.broadcast %225 : vector<6x1xf32> to vector<6x32xf32>
    %397 = arith.addf %395, %396 : vector<6x32xf32>
    %398 = arith.addf %397, %175 : vector<6x32xf32>
    %cst_102 = arith.constant dense<0.000000e+00> : vector<6xf32>
    %399 = vector.multi_reduction <add>, %398, %cst_102 [1] : vector<6x32xf32> to vector<6xf32>
    %400 = vector.shape_cast %399 : vector<6xf32> to vector<6x1xf32>
    %cst_103 = arith.constant 3.200000e+01 : f32
    %401 = vector.broadcast %cst_103 : f32 to vector<6x1xf32>
    %402 = arith.divf %400, %401 : vector<6x1xf32>
    %403 = vector.broadcast %402 : vector<6x1xf32> to vector<6x32xf32>
    %404 = arith.subf %398, %403 : vector<6x32xf32>
    %405 = arith.mulf %404, %404 : vector<6x32xf32>
    %cst_104 = arith.constant dense<0.000000e+00> : vector<6xf32>
    %406 = vector.multi_reduction <add>, %405, %cst_104 [1] : vector<6x32xf32> to vector<6xf32>
    %407 = vector.shape_cast %406 : vector<6xf32> to vector<6x1xf32>
    %cst_105 = arith.constant 3.200000e+01 : f32
    %408 = vector.broadcast %cst_105 : f32 to vector<6x1xf32>
    %409 = arith.divf %407, %408 : vector<6x1xf32>
    %410 = vector.broadcast %402 : vector<6x1xf32> to vector<6x32xf32>
    %411 = arith.subf %398, %410 : vector<6x32xf32>
    %cst_106 = arith.constant 9.99999996E-13 : f32
    %412 = vector.broadcast %cst_106 : f32 to vector<6x1xf32>
    %413 = arith.addf %409, %412 : vector<6x1xf32>
    %414 = math.rsqrt %413 : vector<6x1xf32>
    %415 = vector.broadcast %414 : vector<6x1xf32> to vector<6x32xf32>
    %416 = arith.mulf %411, %415 : vector<6x32xf32>
    %417 = vector.broadcast %147 : vector<1x32xf32> to vector<6x32xf32>
    %418 = arith.mulf %416, %417 : vector<6x32xf32>
    %419 = vector.broadcast %148 : vector<1x32xf32> to vector<6x32xf32>
    %420 = arith.addf %418, %419 : vector<6x32xf32>
    %c0_107 = arith.constant 0 : index
    %c0_108 = arith.constant 0 : index
    %c0_109 = arith.constant 0 : index
    %421 = vector.load %arg12[%c0_107, %c0_108, %c0_109] : memref<1x6x32xf32, #tpu.memory_space<vmem>>, vector<1x6x32xf32>
    %422 = vector.shape_cast %421 : vector<1x6x32xf32> to vector<6x32xf32>
    %423 = vector.shape_cast %420 : vector<6x32xf32> to vector<1x6x32xf32>
    tpu.vector_store %arg12[%c0_107, %c0_108, %c0_109], %423 {strides = array<i32>} : memref<1x6x32xf32, #tpu.memory_space<vmem>>, vector<1x6x32xf32>,
    return
  }
  func.func @transform_0(%arg0: i32) -> (i32, i32, i32) {
    %c0_i32 = arith.constant 0 : i32
    %c0_i32_0 = arith.constant 0 : i32
    %c0_i32_1 = arith.constant 0 : i32
    return %arg0, %c0_i32, %c0_i32_0 : i32, i32, i32
  }
  func.func @transform_1(%arg0: i32) -> (i32, i32) {
    %c0_i32 = arith.constant 0 : i32
    %c0_i32_0 = arith.constant 0 : i32
    %c0_i32_1 = arith.constant 0 : i32
    return %c0_i32, %c0_i32_0 : i32, i32
  }
  func.func @transform_2(%arg0: i32) -> (i32, i32) {
    %c0_i32 = arith.constant 0 : i32
    %c0_i32_0 = arith.constant 0 : i32
    %c0_i32_1 = arith.constant 0 : i32
    return %c0_i32, %c0_i32_0 : i32, i32
  }
  func.func @transform_3(%arg0: i32) -> (i32, i32) {
    %c0_i32 = arith.constant 0 : i32
    %c0_i32_0 = arith.constant 0 : i32
    %c0_i32_1 = arith.constant 0 : i32
    return %c0_i32, %c0_i32_0 : i32, i32
  }
  func.func @transform_4(%arg0: i32) -> (i32, i32) {
    %c0_i32 = arith.constant 0 : i32
    %c0_i32_0 = arith.constant 0 : i32
    %c0_i32_1 = arith.constant 0 : i32
    return %c0_i32, %c0_i32_0 : i32, i32
  }
  func.func @transform_5(%arg0: i32) -> (i32, i32) {
    %c0_i32 = arith.constant 0 : i32
    %c0_i32_0 = arith.constant 0 : i32
    %c0_i32_1 = arith.constant 0 : i32
    return %c0_i32, %c0_i32_0 : i32, i32
  }
  func.func @transform_6(%arg0: i32) -> (i32, i32) {
    %c0_i32 = arith.constant 0 : i32
    %c0_i32_0 = arith.constant 0 : i32
    %c0_i32_1 = arith.constant 0 : i32
    return %c0_i32, %c0_i32_0 : i32, i32
  }
  func.func @transform_7(%arg0: i32) -> (i32, i32) {
    %c0_i32 = arith.constant 0 : i32
    %c0_i32_0 = arith.constant 0 : i32
    %c0_i32_1 = arith.constant 0 : i32
    return %c0_i32, %c0_i32_0 : i32, i32
  }
  func.func @transform_8(%arg0: i32) -> (i32, i32) {
    %c0_i32 = arith.constant 0 : i32
    %c0_i32_0 = arith.constant 0 : i32
    %c0_i32_1 = arith.constant 0 : i32
    return %c0_i32, %c0_i32_0 : i32, i32
  }
  func.func @transform_9(%arg0: i32) -> (i32, i32) {
    %c0_i32 = arith.constant 0 : i32
    %c0_i32_0 = arith.constant 0 : i32
    %c0_i32_1 = arith.constant 0 : i32
    return %c0_i32, %c0_i32_0 : i32, i32
  }
  func.func @transform_10(%arg0: i32) -> (i32, i32) {
    %c0_i32 = arith.constant 0 : i32
    %c0_i32_0 = arith.constant 0 : i32
    %c0_i32_1 = arith.constant 0 : i32
    return %c0_i32, %c0_i32_0 : i32, i32
  }
  func.func @transform_11(%arg0: i32) -> (i32, i32, i32) {
    %c0_i32 = arith.constant 0 : i32
    %c0_i32_0 = arith.constant 0 : i32
    %c0_i32_1 = arith.constant 0 : i32
    return %arg0, %c0_i32, %c0_i32_0 : i32, i32, i32
  }
  func.func @transform_12(%arg0: i32) -> (i32, i32, i32, i32) {
    %c0_i32 = arith.constant 0 : i32
    %c0_i32_0 = arith.constant 0 : i32
    %c0_i32_1 = arith.constant 0 : i32
    %c0_i32_2 = arith.constant 0 : i32
    return %arg0, %c0_i32, %c0_i32_0, %c0_i32_1 : i32, i32, i32, i32
  }
}

</mosaic_0001>

<llo_original>
// kernel: tpu_custom_call.1
$region0: #{tpu_custom_call.1}
  #allocation0 [shape = 'u32[]', space=smem, size = 0x4, offset = 0x4, fixed_abs, tag = 'smem constant byte address 0x4 - core index']
  #allocation1 [shape = 'u32[144,128]{1,0:T(1,128)}', space=vmem, size = 0x12000, scoped, tag = 'internal scratch']
  %s0 = inlined_call_operand.vmem [shape: f32[1,6,32], index: 0, kind: input, shape index: {}]
  %s1 = inlined_call_operand.vmem [shape: f32[32,96], index: 1, kind: input, shape index: {}]
  %s2 = inlined_call_operand.hbm [shape: f32[1,96], index: 2, kind: input, shape index: {}]
  %s3 = inlined_call_operand.vmem [shape: f32[32,32], index: 3, kind: input, shape index: {}]
  %s4 = inlined_call_operand.vmem [shape: f32[6,32], index: 4, kind: input, shape index: {}]
  %s5 = inlined_call_operand.vmem [shape: f32[32,64], index: 5, kind: input, shape index: {}]
  %s6 = inlined_call_operand.hbm [shape: f32[1,64], index: 6, kind: input, shape index: {}]
  %s7 = inlined_call_operand.vmem [shape: f32[64,32], index: 7, kind: input, shape index: {}]
  %s8 = inlined_call_operand.hbm [shape: f32[6,7], index: 8, kind: input, shape index: {}]
  %s9 = inlined_call_operand.vmem [shape: f32[6,7], index: 9, kind: input, shape index: {}]
  %s10 = inlined_call_operand.hbm [shape: f32[6,42], index: 10, kind: input, shape index: {}]
  %s11 = inlined_call_operand.vmem [shape: f32[1,6,32], index: 11, kind: output, shape index: {0}]
  %s12 = inlined_call_operand.vmem [shape: f32[1,4,6,6], index: 12, kind: output, shape index: {1}]
  %13 = xla_tuple %s11, %s12
  %s14 = sld [smem:[#allocation0]]
  $region78: #{tpu_custom_call.1} parent=0
    _
  %s16 = ssub.s32 1, %s14
  %s17 = scalar_select 0, %s16, %s14
  $region1: #{tpu_custom_call.1} parent=0
    #allocation2 [shape = 'u8[512]{0}', space=vmem, size = 0x400, scoped, tag = 'input window, operand 2, single buffered']
    #allocation3 [shape = 's32[1]{0}', space=sflag, size = 0x4, scoped, tag = 'scoped memory for tpu_custom_call.1']
    #allocation4 [shape = 'u8[512]{0}', space=vmem, size = 0x400, scoped, tag = 'input window, operand 6, single buffered']
    #allocation5 [shape = 's32[1]{0}', space=sflag, size = 0x4, scoped, tag = 'scoped memory for tpu_custom_call.1']
    #allocation6 [shape = 'u8[4096]{0}', space=vmem, size = 0x1000, scoped, tag = 'input window, operand 8, single buffered']
    #allocation7 [shape = 'u8[4096]{0}', space=vmem, size = 0x1000, scoped, tag = 'input window, operand 10, single buffered']
    #allocation8 [shape = 's32[1]{0}', space=sflag, size = 0x4, scoped, tag = 'scoped memory for tpu_custom_call.1']
    %18 = vsyncpa [#allocation3], 0
    %19 = vsyncpa [#allocation5], 0
    %20 = vsyncpa [#allocation8], 0
    // Predicated region
    $region2: #{tpu_custom_call.1} parent=1 // pred_check
      _
    $region3: #{tpu_custom_call.1} parent=1 // pred_check_branch
      %22 = sbr.rel (0) target = $region5
    $region4: #{tpu_custom_call.1} parent=1 // pred_region
      _
    $region5: #{tpu_custom_call.1} parent=1 // pred_fallthru
      _
    // Predicated region
    $region6: #{tpu_custom_call.1} parent=1 // pred_check
      _
    $region7: #{tpu_custom_call.1} parent=1 // pred_check_branch
      %24 = sbr.rel (0) target = $region9
    $region8: #{tpu_custom_call.1} parent=1 // pred_region
      _
    $region9: #{tpu_custom_call.1} parent=1 // pred_fallthru
      _
    // Predicated region
    $region10: #{tpu_custom_call.1} parent=1 // pred_check
      _
    $region11: #{tpu_custom_call.1} parent=1 // pred_check_branch
      %26 = sbr.rel (0) target = $region13
    $region12: #{tpu_custom_call.1} parent=1 // pred_region
      %s28 = ssub.s32 16, 16
      %29 = vsyncadd [#allocation3], %s28
      %s31 = sshll.u32 [#allocation2], 4
      %s32 = int_to_ptr.vmem [resolvable:$true] %s31
      %34 = dma.hbm_to_vmem [thread:$0]  %s2, 16, %s32, [#allocation3]
    $region13: #{tpu_custom_call.1} parent=1 // pred_fallthru
      _
    // Predicated region
    $region14: #{tpu_custom_call.1} parent=1 // pred_check
      _
    $region15: #{tpu_custom_call.1} parent=1 // pred_check_branch
      %36 = sbr.rel (0) target = $region17
    $region16: #{tpu_custom_call.1} parent=1 // pred_region
      _
    $region17: #{tpu_custom_call.1} parent=1 // pred_fallthru
      _
    // Predicated region
    $region18: #{tpu_custom_call.1} parent=1 // pred_check
      _
    $region19: #{tpu_custom_call.1} parent=1 // pred_check_branch
      %38 = sbr.rel (0) target = $region21
    $region20: #{tpu_custom_call.1} parent=1 // pred_region
      _
    $region21: #{tpu_custom_call.1} parent=1 // pred_fallthru
      _
    // Predicated region
    $region22: #{tpu_custom_call.1} parent=1 // pred_check
      _
    $region23: #{tpu_custom_call.1} parent=1 // pred_check_branch
      %40 = sbr.rel (0) target = $region25
    $region24: #{tpu_custom_call.1} parent=1 // pred_region
      _
    $region25: #{tpu_custom_call.1} parent=1 // pred_fallthru
      _
    // Predicated region
    $region26: #{tpu_custom_call.1} parent=1 // pred_check
      _
    $region27: #{tpu_custom_call.1} parent=1 // pred_check_branch
      %42 = sbr.rel (0) target = $region29
    $region28: #{tpu_custom_call.1} parent=1 // pred_region
      %s44 = ssub.s32 16, 16
      %45 = vsyncadd [#allocation5], %s44
      %s47 = sshll.u32 [#allocation4], 4
      %s48 = int_to_ptr.vmem [resolvable:$true] %s47
      %50 = dma.hbm_to_vmem [thread:$0]  %s6, 16, %s48, [#allocation5]
    $region29: #{tpu_custom_call.1} parent=1 // pred_fallthru
      _
    // Predicated region
    $region30: #{tpu_custom_call.1} parent=1 // pred_check
      _
    $region31: #{tpu_custom_call.1} parent=1 // pred_check_branch
      %52 = sbr.rel (0) target = $region33
    $region32: #{tpu_custom_call.1} parent=1 // pred_region
      _
    $region33: #{tpu_custom_call.1} parent=1 // pred_fallthru
      _
    // Predicated region
    $region34: #{tpu_custom_call.1} parent=1 // pred_check
      _
    $region35: #{tpu_custom_call.1} parent=1 // pred_check_branch
      %54 = sbr.rel (0) target = $region37
    $region36: #{tpu_custom_call.1} parent=1 // pred_region
      %s56 = ssub.s32 128, 128
      %57 = vsyncadd [#allocation5], %s56
      %s59 = sshll.u32 [#allocation6], 4
      %s60 = int_to_ptr.vmem [resolvable:$true] %s59
      %62 = dma.hbm_to_vmem [thread:$0]  %s8, 128, %s60, [#allocation5]
    $region37: #{tpu_custom_call.1} parent=1 // pred_fallthru
      _
    // Predicated region
    $region38: #{tpu_custom_call.1} parent=1 // pred_check
      _
    $region39: #{tpu_custom_call.1} parent=1 // pred_check_branch
      %64 = sbr.rel (0) target = $region41
    $region40: #{tpu_custom_call.1} parent=1 // pred_region
      _
    $region41: #{tpu_custom_call.1} parent=1 // pred_fallthru
      _
    // Predicated region
    $region42: #{tpu_custom_call.1} parent=1 // pred_check
      _
    $region43: #{tpu_custom_call.1} parent=1 // pred_check_branch
      %66 = sbr.rel (0) target = $region45
    $region44: #{tpu_custom_call.1} parent=1 // pred_region
      %s68 = ssub.s32 128, 128
      %69 = vsyncadd [#allocation8], %s68
      %s71 = sshll.u32 [#allocation7], 4
      %s72 = int_to_ptr.vmem [resolvable:$true] %s71
      %74 = dma.hbm_to_vmem [thread:$0]  %s10, 128, %s72, [#allocation8]
    $region45: #{tpu_custom_call.1} parent=1 // pred_fallthru
      _
    // Predicated region
    $region46: #{tpu_custom_call.1} parent=1 // pred_check
      _
    $region47: #{tpu_custom_call.1} parent=1 // pred_check_branch
      %76 = sbr.rel (0) target = $region49
    $region48: #{tpu_custom_call.1} parent=1 // pred_region
      %77 = dma.done [#allocation3], 16
    $region49: #{tpu_custom_call.1} parent=1 // pred_fallthru
      _
    // Predicated region
    $region50: #{tpu_custom_call.1} parent=1 // pred_check
      _
    $region51: #{tpu_custom_call.1} parent=1 // pred_check_branch
      %79 = sbr.rel (0) target = $region53
    $region52: #{tpu_custom_call.1} parent=1 // pred_region
      %80 = dma.done [#allocation5], 16
    $region53: #{tpu_custom_call.1} parent=1 // pred_fallthru
      _
    // Predicated region
    $region54: #{tpu_custom_call.1} parent=1 // pred_check
      _
    $region55: #{tpu_custom_call.1} parent=1 // pred_check_branch
      %82 = sbr.rel (0) target = $region57
    $region56: #{tpu_custom_call.1} parent=1 // pred_region
      %83 = dma.done [#allocation5], 128
    $region57: #{tpu_custom_call.1} parent=1 // pred_fallthru
      _
    // Predicated region
    $region58: #{tpu_custom_call.1} parent=1 // pred_check
      _
    $region59: #{tpu_custom_call.1} parent=1 // pred_check_branch
      %85 = sbr.rel (0) target = $region61
    $region60: #{tpu_custom_call.1} parent=1 // pred_region
      %86 = dma.done [#allocation8], 128
    $region61: #{tpu_custom_call.1} parent=1 // pred_fallthru
      _
    %v87 = vld [vmem:[%s0] sm:$0x3f]
    %v88 = vld [vmem:[%s1] sm:$0xff]
    %v89 = vld [vmem:[%s1 + $0x8] sm:$0xff]
    %v90 = vld [vmem:[%s1 + $0x10] sm:$0xff]
    %v91 = vld [vmem:[%s1 + $0x18] sm:$0xff]
    %v92 = vld [vmem:[#allocation2] sm:$0x1]
    %v94 = vlaneseq
    %v95 = vshrl.u32 %v94, 7
    %v96 = vsub.s32 0, %v95
    %v97 = vrot.slane %v92, %v96
    %vm99 = vcmask 261120
    %v101 = vsel %vm99, %v87, 0
    %103 = vmatprep.subr.mxu0 0.0
    %104 = vmatpush1.msra.mxu0 %v88
    %105 = vmatprep.subr.mxu0 0.0
    %106 = vmatpush1.msra.mxu0 %v89
    %107 = vmatprep.subr.mxu0 0.0
    %108 = vmatpush1.msra.mxu0 %v90
    %109 = vmatprep.subr.mxu0 0.0
    %110 = vmatpush1.msra.mxu0 %v91
    %111 = vmatprep.subr.mxu0 0.0
    %112 = vmatpush1.msra.mxu0 0.0
    %113 = vmatprep.subr.mxu0 0.0
    %114 = vmatpush1.msra.mxu0 0.0
    %115 = vmatprep.subr.mxu0 0.0
    %116 = vmatpush1.msra.mxu0 0.0
    %117 = vmatprep.subr.mxu0 0.0
    %118 = vmatpush1.msra.mxu0 0.0
    %119 = vmatprep.subr.mxu0 0.0
    %120 = vmatpush1.msra.mxu0 0.0
    %121 = vmatprep.subr.mxu0 0.0
    %122 = vmatpush1.msra.mxu0 0.0
    %123 = vmatprep.subr.mxu0 0.0
    %124 = vmatpush1.msra.mxu0 0.0
    %125 = vmatprep.subr.mxu0 0.0
    %126 = vmatpush1.msra.mxu0 0.0
    %127 = vmatprep.subr.mxu0 0.0
    %128 = vmatpush1.msra.mxu0 0.0
    %129 = vmatprep.subr.mxu0 0.0
    %130 = vmatpush1.msra.mxu0 0.0
    %131 = vmatprep.subr.mxu0 0.0
    %132 = vmatpush1.msra.mxu0 0.0
    %133 = vmatprep.subr.mxu0 0.0
    %134 = vmatpush1.msra.mxu0 0.0
    %135 = vmatprep.subr.mxu0 0.0
    %136 = vmatpush1.msra.mxu0 0.0
    %137 = vmatprep.subr.mxu0 0.0
    %138 = vmatpush1.msra.mxu0 0.0
    %139 = vmatprep.subr.mxu0 0.0
    %140 = vmatpush1.msra.mxu0 0.0
    %141 = vmatprep.subr.mxu0 0.0
    %142 = vmatpush1.msra.mxu0 0.0
    %143 = vmatprep.subr.mxu0 0.0
    %144 = vmatpush1.msra.mxu0 0.0
    %145 = vmatprep.subr.mxu0 0.0
    %146 = vmatpush1.msra.mxu0 0.0
    %147 = vmatprep.subr.mxu0 0.0
    %148 = vmatpush1.msra.mxu0 0.0
    %149 = vmatprep.subr.mxu0 0.0
    %150 = vmatpush1.msra.mxu0 0.0
    %151 = vmatprep.subr.mxu0 0.0
    %152 = vmatpush1.msra.mxu0 0.0
    %153 = vmatprep.subr.mxu0 0.0
    %154 = vmatpush1.msra.mxu0 0.0
    %155 = vmatprep.subr.mxu0 0.0
    %156 = vmatpush1.msra.mxu0 0.0
    %157 = vmatprep.subr.mxu0 0.0
    %158 = vmatpush1.msra.mxu0 0.0
    %159 = vmatprep.subr.mxu0 0.0
    %160 = vmatpush1.msra.mxu0 0.0
    %161 = vmatprep.subr.mxu0 0.0
    %162 = vmatpush1.msra.mxu0 0.0
    %163 = vmatprep.subr.mxu0 0.0
    %164 = vmatpush1.msra.mxu0 0.0
    %165 = vmatprep.subr.mxu0 0.0
    %166 = vmatpush1.msra.mxu0 0.0
    %167 = vmatprep.mubr.f32.mxu0 0.0
    %168 = vmatmul.mubr.f32.gmra.mrb[0].mxu0 %v101
    %v169 = vpop.f32.mrb[0].mxu0
    %v170 = vadd.f32 %v97, %v169
    %v171 = vpop.f32.mrb[0].mxu0
    %172 = vdwg.mxu0
    %v173 = vlaneseq
    %v174 = vand.u32 %v173, 127
    %v175 = vlaneseq
    %v176 = vshrl.u32 %v175, 7
    %vm177 = vcmp.ge.s32.totalorder %v176, 0
    %vm178 = vcmp.lt.s32.totalorder %v176, 3
    %vm179 = vmand %vm177, %vm178
    %vm180 = vcmp.ge.s32.totalorder %v174, 0
    %vm181 = vcmp.lt.s32.totalorder %v174, 3
    %vm182 = vmand %vm180, %vm181
    %vm183 = vmand %vm179, %vm182
    %vm184 = vcmp.ge.s32.totalorder %v176, 3
    %vm185 = vcmp.lt.s32.totalorder %v176, 6
    %vm186 = vmand %vm184, %vm185
    %vm187 = vcmp.ge.s32.totalorder %v174, 3
    %vm188 = vcmp.lt.s32.totalorder %v174, 6
    %vm189 = vmand %vm187, %vm188
    %vm190 = vmand %vm186, %vm189
    %vm191 = vmor %vm183, %vm190
    %vm192 = vcmp.lt.s32.totalorder %v174, 8
    %vm193 = vmand %vm180, %vm192
    %v194 = vsel %vm193, %v170, 0.0
    %196 = vrot.lane.b32.xlu0 %v170, 96
    %v197 = vpop.permute.xlu0 %196
    %v199 = vsel %vm99, %v194, 0
    %v201 = vsel %vm99, %v197, 0
    %203 = vmatprep.subr.mxu0 0.0
    %204 = vmatpush1.xpose.msra.mxu0 %v201
    %205 = vmatprep.subr.mxu0 0.0
    %206 = vmatpush1.xpose.msra.mxu0 0.0
    %207 = vmatprep.subr.mxu0 0.0
    %208 = vmatpush1.xpose.msra.mxu0 0.0
    %209 = vmatprep.subr.mxu0 0.0
    %210 = vmatpush1.xpose.msra.mxu0 0.0
    %211 = vmatprep.subr.mxu0 0.0
    %212 = vmatpush1.xpose.msra.mxu0 0.0
    %213 = vmatprep.subr.mxu0 0.0
    %214 = vmatpush1.xpose.msra.mxu0 0.0
    %215 = vmatprep.subr.mxu0 0.0
    %216 = vmatpush1.xpose.msra.mxu0 0.0
    %217 = vmatprep.subr.mxu0 0.0
    %218 = vmatpush1.xpose.msra.mxu0 0.0
    %219 = vmatprep.subr.mxu0 0.0
    %220 = vmatpush1.xpose.msra.mxu0 0.0
    %221 = vmatprep.subr.mxu0 0.0
    %222 = vmatpush1.xpose.msra.mxu0 0.0
    %223 = vmatprep.subr.mxu0 0.0
    %224 = vmatpush1.xpose.msra.mxu0 0.0
    %225 = vmatprep.subr.mxu0 0.0
    %226 = vmatpush1.xpose.msra.mxu0 0.0
    %227 = vmatprep.subr.mxu0 0.0
    %228 = vmatpush1.xpose.msra.mxu0 0.0
    %229 = vmatprep.subr.mxu0 0.0
    %230 = vmatpush1.xpose.msra.mxu0 0.0
    %231 = vmatprep.subr.mxu0 0.0
    %232 = vmatpush1.xpose.msra.mxu0 0.0
    %233 = vmatprep.subr.mxu0 0.0
    %234 = vmatpush1.xpose.msra.mxu0 0.0
    %235 = vmatprep.subr.mxu0 0.0
    %236 = vmatpush1.xpose.msra.mxu0 0.0
    %237 = vmatprep.subr.mxu0 0.0
    %238 = vmatpush1.xpose.msra.mxu0 0.0
    %239 = vmatprep.subr.mxu0 0.0
    %240 = vmatpush1.xpose.msra.mxu0 0.0
    %241 = vmatprep.subr.mxu0 0.0
    %242 = vmatpush1.xpose.msra.mxu0 0.0
    %243 = vmatprep.subr.mxu0 0.0
    %244 = vmatpush1.xpose.msra.mxu0 0.0
    %245 = vmatprep.subr.mxu0 0.0
    %246 = vmatpush1.xpose.msra.mxu0 0.0
    %247 = vmatprep.subr.mxu0 0.0
    %248 = vmatpush1.xpose.msra.mxu0 0.0
    %249 = vmatprep.subr.mxu0 0.0
    %250 = vmatpush1.xpose.msra.mxu0 0.0
    %251 = vmatprep.subr.mxu0 0.0
    %252 = vmatpush1.xpose.msra.mxu0 0.0
    %253 = vmatprep.subr.mxu0 0.0
    %254 = vmatpush1.xpose.msra.mxu0 0.0
    %255 = vmatprep.subr.mxu0 0.0
    %256 = vmatpush1.xpose.msra.mxu0 0.0
    %257 = vmatprep.subr.mxu0 0.0
    %258 = vmatpush1.xpose.msra.mxu0 0.0
    %259 = vmatprep.subr.mxu0 0.0
    %260 = vmatpush1.xpose.msra.mxu0 0.0
    %261 = vmatprep.subr.mxu0 0.0
    %262 = vmatpush1.xpose.msra.mxu0 0.0
    %263 = vmatprep.subr.mxu0 0.0
    %264 = vmatpush1.xpose.msra.mxu0 0.0
    %265 = vmatprep.subr.mxu0 0.0
    %266 = vmatpush1.xpose.msra.mxu0 0.0
    %267 = vmatprep.mubr.f32.mxu0 0.0
    %268 = vmatmul.mubr.f32.gmra.mrb[0].mxu0 %v199
    %v269 = vpop.f32.mrb[0].mxu0
    %v270 = vadd.f32 0.0, %v269
    %v271 = vpop.f32.mrb[0].mxu0
    %272 = vdwg.mxu0
    %v273 = vsel %vm191, %v270, -1e+30
    %vm274 = vcmask 46080
    %v275 = vsel %vm274, %v273, -inf
    %276 = vmax.xlane.f32.xlu0 %v275
    %v277 = vpop.xlane.xlu0 %276
    %v278 = vsub.f32 %v273, %v277
    %v279 = vmul.f32 %v278, 1.442695
    %v280 = vpow.pop %v279
    %v281 = vsel %vm274, %v280, 0.0
    %282 = vadd.xlane.f32.xlu0 %v281
    %v283 = vpop.xlane.xlu0 %282
    %v284 = vrcp.pop %v283
    %v285 = vmul.f32 %v280, %v284
    %286 = vst.msk [vmem:[%s12] sm:$0x3f] %vm274, %v285
    %287 = vrot.lane.b32.xlu0 %v170, 64
    %v288 = vpop.permute.xlu0 %287
    %v290 = vsel %vm193, %v288, 0.0
    %vm291 = vcmp.ge.s32.totalorder %v174, 8
    %vm292 = vcmp.lt.s32.totalorder %v174, 16
    %vm293 = vmand %vm291, %vm292
    %v294 = vsel %vm293, %v170, 0.0
    %v296 = vsel %vm99, %v294, 0
    %298 = vmatprep.subr.mxu0 0.0
    %299 = vmatpush1.xpose.msra.mxu0 %v201
    %300 = vmatprep.subr.mxu0 0.0
    %301 = vmatpush1.xpose.msra.mxu0 0.0
    %302 = vmatprep.subr.mxu0 0.0
    %303 = vmatpush1.xpose.msra.mxu0 0.0
    %304 = vmatprep.subr.mxu0 0.0
    %305 = vmatpush1.xpose.msra.mxu0 0.0
    %306 = vmatprep.subr.mxu0 0.0
    %307 = vmatpush1.xpose.msra.mxu0 0.0
    %308 = vmatprep.subr.mxu0 0.0
    %309 = vmatpush1.xpose.msra.mxu0 0.0
    %310 = vmatprep.subr.mxu0 0.0
    %311 = vmatpush1.xpose.msra.mxu0 0.0
    %312 = vmatprep.subr.mxu0 0.0
    %313 = vmatpush1.xpose.msra.mxu0 0.0
    %314 = vmatprep.subr.mxu0 0.0
    %315 = vmatpush1.xpose.msra.mxu0 0.0
    %316 = vmatprep.subr.mxu0 0.0
    %317 = vmatpush1.xpose.msra.mxu0 0.0
    %318 = vmatprep.subr.mxu0 0.0
    %319 = vmatpush1.xpose.msra.mxu0 0.0
    %320 = vmatprep.subr.mxu0 0.0
    %321 = vmatpush1.xpose.msra.mxu0 0.0
    %322 = vmatprep.subr.mxu0 0.0
    %323 = vmatpush1.xpose.msra.mxu0 0.0
    %324 = vmatprep.subr.mxu0 0.0
    %325 = vmatpush1.xpose.msra.mxu0 0.0
    %326 = vmatprep.subr.mxu0 0.0
    %327 = vmatpush1.xpose.msra.mxu0 0.0
    %328 = vmatprep.subr.mxu0 0.0
    %329 = vmatpush1.xpose.msra.mxu0 0.0
    %330 = vmatprep.subr.mxu0 0.0
    %331 = vmatpush1.xpose.msra.mxu0 0.0
    %332 = vmatprep.subr.mxu0 0.0
    %333 = vmatpush1.xpose.msra.mxu0 0.0
    %334 = vmatprep.subr.mxu0 0.0
    %335 = vmatpush1.xpose.msra.mxu0 0.0
    %336 = vmatprep.subr.mxu0 0.0
    %337 = vmatpush1.xpose.msra.mxu0 0.0
    %338 = vmatprep.subr.mxu0 0.0
    %339 = vmatpush1.xpose.msra.mxu0 0.0
    %340 = vmatprep.subr.mxu0 0.0
    %341 = vmatpush1.xpose.msra.mxu0 0.0
    %342 = vmatprep.subr.mxu0 0.0
    %343 = vmatpush1.xpose.msra.mxu0 0.0
    %344 = vmatprep.subr.mxu0 0.0
    %345 = vmatpush1.xpose.msra.mxu0 0.0
    %346 = vmatprep.subr.mxu0 0.0
    %347 = vmatpush1.xpose.msra.mxu0 0.0
    %348 = vmatprep.subr.mxu0 0.0
    %349 = vmatpush1.xpose.msra.mxu0 0.0
    %350 = vmatprep.subr.mxu0 0.0
    %351 = vmatpush1.xpose.msra.mxu0 0.0
    %352 = vmatprep.subr.mxu0 0.0
    %353 = vmatpush1.xpose.msra.mxu0 0.0
    %354 = vmatprep.subr.mxu0 0.0
    %355 = vmatpush1.xpose.msra.mxu0 0.0
    %356 = vmatprep.subr.mxu0 0.0
    %357 = vmatpush1.xpose.msra.mxu0 0.0
    %358 = vmatprep.subr.mxu0 0.0
    %359 = vmatpush1.xpose.msra.mxu0 0.0
    %360 = vmatprep.subr.mxu0 0.0
    %361 = vmatpush1.xpose.msra.mxu0 0.0
    %362 = vmatprep.mubr.f32.mxu0 0.0
    %363 = vmatmul.mubr.f32.gmra.mrb[0].mxu0 %v296
    %v364 = vpop.f32.mrb[0].mxu0
    %v365 = vadd.f32 0.0, %v364
    %v366 = vpop.f32.mrb[0].mxu0
    %367 = vdwg.mxu0
    %v368 = vsel %vm191, %v365, -1e+30
    %v369 = vsel %vm274, %v368, -inf
    %370 = vmax.xlane.f32.xlu0 %v369
    %v371 = vpop.xlane.xlu0 %370
    %v372 = vsub.f32 %v368, %v371
    %v373 = vmul.f32 %v372, 1.442695
    %v374 = vpow.pop %v373
    %v375 = vsel %vm274, %v374, 0.0
    %376 = vadd.xlane.f32.xlu0 %v375
    %v377 = vpop.xlane.xlu0 %376
    %v378 = vrcp.pop %v377
    %v379 = vmul.f32 %v374, %v378
    %s380 = scalar_lea.vmem %s12, 8
    %381 = vst.msk [vmem:[%s380] sm:$0x3f] %vm274, %v379
    %v382 = vsel %vm293, %v288, 0.0
    %vm383 = vcmask 48128
    %v385 = vsel %vm383, %v379, 0
    %vm387 = vcmask 1045504
    %v389 = vsel %vm387, %v382, 0
    %391 = vmatprep.subr.mxu0 0.0
    %392 = vmatpush1.msra.mxu0 %v389
    %393 = vmatprep.subr.mxu0 0.0
    %394 = vmatpush1.msra.mxu0 0.0
    %395 = vmatprep.subr.mxu0 0.0
    %396 = vmatpush1.msra.mxu0 0.0
    %397 = vmatprep.subr.mxu0 0.0
    %398 = vmatpush1.msra.mxu0 0.0
    %399 = vmatprep.subr.mxu0 0.0
    %400 = vmatpush1.msra.mxu0 0.0
    %401 = vmatprep.subr.mxu0 0.0
    %402 = vmatpush1.msra.mxu0 0.0
    %403 = vmatprep.subr.mxu0 0.0
    %404 = vmatpush1.msra.mxu0 0.0
    %405 = vmatprep.subr.mxu0 0.0
    %406 = vmatpush1.msra.mxu0 0.0
    %407 = vmatprep.subr.mxu0 0.0
    %408 = vmatpush1.msra.mxu0 0.0
    %409 = vmatprep.subr.mxu0 0.0
    %410 = vmatpush1.msra.mxu0 0.0
    %411 = vmatprep.subr.mxu0 0.0
    %412 = vmatpush1.msra.mxu0 0.0
    %413 = vmatprep.subr.mxu0 0.0
    %414 = vmatpush1.msra.mxu0 0.0
    %415 = vmatprep.subr.mxu0 0.0
    %416 = vmatpush1.msra.mxu0 0.0
    %417 = vmatprep.subr.mxu0 0.0
    %418 = vmatpush1.msra.mxu0 0.0
    %419 = vmatprep.subr.mxu0 0.0
    %420 = vmatpush1.msra.mxu0 0.0
    %421 = vmatprep.subr.mxu0 0.0
    %422 = vmatpush1.msra.mxu0 0.0
    %423 = vmatprep.subr.mxu0 0.0
    %424 = vmatpush1.msra.mxu0 0.0
    %425 = vmatprep.subr.mxu0 0.0
    %426 = vmatpush1.msra.mxu0 0.0
    %427 = vmatprep.subr.mxu0 0.0
    %428 = vmatpush1.msra.mxu0 0.0
    %429 = vmatprep.subr.mxu0 0.0
    %430 = vmatpush1.msra.mxu0 0.0
    %431 = vmatprep.subr.mxu0 0.0
    %432 = vmatpush1.msra.mxu0 0.0
    %433 = vmatprep.subr.mxu0 0.0
    %434 = vmatpush1.msra.mxu0 0.0
    %435 = vmatprep.subr.mxu0 0.0
    %436 = vmatpush1.msra.mxu0 0.0
    %437 = vmatprep.subr.mxu0 0.0
    %438 = vmatpush1.msra.mxu0 0.0
    %439 = vmatprep.subr.mxu0 0.0
    %440 = vmatpush1.msra.mxu0 0.0
    %441 = vmatprep.subr.mxu0 0.0
    %442 = vmatpush1.msra.mxu0 0.0
    %443 = vmatprep.subr.mxu0 0.0
    %444 = vmatpush1.msra.mxu0 0.0
    %445 = vmatprep.subr.mxu0 0.0
    %446 = vmatpush1.msra.mxu0 0.0
    %447 = vmatprep.subr.mxu0 0.0
    %448 = vmatpush1.msra.mxu0 0.0
    %449 = vmatprep.subr.mxu0 0.0
    %450 = vmatpush1.msra.mxu0 0.0
    %451 = vmatprep.subr.mxu0 0.0
    %452 = vmatpush1.msra.mxu0 0.0
    %453 = vmatprep.subr.mxu0 0.0
    %454 = vmatpush1.msra.mxu0 0.0
    %455 = vmatprep.mubr.f32.mxu0 0.0
    %456 = vmatmul.mubr.f32.gmra.mrb[0].mxu0 %v385
    %v457 = vpop.f32.mrb[0].mxu0
    %v458 = vadd.f32 0.0, %v457
    %v459 = vpop.f32.mrb[0].mxu0
    %460 = vdwg.mxu0
    %v462 = vsel %vm383, %v285, 0
    %v465 = vsel %vm387, %v290, 0
    %467 = vmatprep.subr.mxu0 0.0
    %468 = vmatpush1.msra.mxu0 %v465
    %469 = vmatprep.subr.mxu0 0.0
    %470 = vmatpush1.msra.mxu0 0.0
    %471 = vmatprep.subr.mxu0 0.0
    %472 = vmatpush1.msra.mxu0 0.0
    %473 = vmatprep.subr.mxu0 0.0
    %474 = vmatpush1.msra.mxu0 0.0
    %475 = vmatprep.subr.mxu0 0.0
    %476 = vmatpush1.msra.mxu0 0.0
    %477 = vmatprep.subr.mxu0 0.0
    %478 = vmatpush1.msra.mxu0 0.0
    %479 = vmatprep.subr.mxu0 0.0
    %480 = vmatpush1.msra.mxu0 0.0
    %481 = vmatprep.subr.mxu0 0.0
    %482 = vmatpush1.msra.mxu0 0.0
    %483 = vmatprep.subr.mxu0 0.0
    %484 = vmatpush1.msra.mxu0 0.0
    %485 = vmatprep.subr.mxu0 0.0
    %486 = vmatpush1.msra.mxu0 0.0
    %487 = vmatprep.subr.mxu0 0.0
    %488 = vmatpush1.msra.mxu0 0.0
    %489 = vmatprep.subr.mxu0 0.0
    %490 = vmatpush1.msra.mxu0 0.0
    %491 = vmatprep.subr.mxu0 0.0
    %492 = vmatpush1.msra.mxu0 0.0
    %493 = vmatprep.subr.mxu0 0.0
    %494 = vmatpush1.msra.mxu0 0.0
    %495 = vmatprep.subr.mxu0 0.0
    %496 = vmatpush1.msra.mxu0 0.0
    %497 = vmatprep.subr.mxu0 0.0
    %498 = vmatpush1.msra.mxu0 0.0
    %499 = vmatprep.subr.mxu0 0.0
    %500 = vmatpush1.msra.mxu0 0.0
    %501 = vmatprep.subr.mxu0 0.0
    %502 = vmatpush1.msra.mxu0 0.0
    %503 = vmatprep.subr.mxu0 0.0
    %504 = vmatpush1.msra.mxu0 0.0
    %505 = vmatprep.subr.mxu0 0.0
    %506 = vmatpush1.msra.mxu0 0.0
    %507 = vmatprep.subr.mxu0 0.0
    %508 = vmatpush1.msra.mxu0 0.0
    %509 = vmatprep.subr.mxu0 0.0
    %510 = vmatpush1.msra.mxu0 0.0
    %511 = vmatprep.subr.mxu0 0.0
    %512 = vmatpush1.msra.mxu0 0.0
    %513 = vmatprep.subr.mxu0 0.0
    %514 = vmatpush1.msra.mxu0 0.0
    %515 = vmatprep.subr.mxu0 0.0
    %516 = vmatpush1.msra.mxu0 0.0
    %517 = vmatprep.subr.mxu0 0.0
    %518 = vmatpush1.msra.mxu0 0.0
    %519 = vmatprep.subr.mxu0 0.0
    %520 = vmatpush1.msra.mxu0 0.0
    %521 = vmatprep.subr.mxu0 0.0
    %522 = vmatpush1.msra.mxu0 0.0
    %523 = vmatprep.subr.mxu0 0.0
    %524 = vmatpush1.msra.mxu0 0.0
    %525 = vmatprep.subr.mxu0 0.0
    %526 = vmatpush1.msra.mxu0 0.0
    %527 = vmatprep.subr.mxu0 0.0
    %528 = vmatpush1.msra.mxu0 0.0
    %529 = vmatprep.subr.mxu0 0.0
    %530 = vmatpush1.msra.mxu0 0.0
    %531 = vmatprep.mubr.f32.mxu0 0.0
    %532 = vmatmul.mubr.f32.gmra.mrb[0].mxu0 %v462
    %v533 = vpop.f32.mrb[0].mxu0
    %v534 = vadd.f32 %v458, %v533
    %v535 = vpop.f32.mrb[0].mxu0
    %536 = vdwg.mxu0
    %vm537 = vcmp.ge.s32.totalorder %v174, 16
    %vm538 = vcmp.lt.s32.totalorder %v174, 24
    %vm539 = vmand %vm537, %vm538
    %v540 = vsel %vm539, %v170, 0.0
    %v542 = vsel %vm99, %v540, 0
    %544 = vmatprep.subr.mxu0 0.0
    %545 = vmatpush1.xpose.msra.mxu0 %v201
    %546 = vmatprep.subr.mxu0 0.0
    %547 = vmatpush1.xpose.msra.mxu0 0.0
    %548 = vmatprep.subr.mxu0 0.0
    %549 = vmatpush1.xpose.msra.mxu0 0.0
    %550 = vmatprep.subr.mxu0 0.0
    %551 = vmatpush1.xpose.msra.mxu0 0.0
    %552 = vmatprep.subr.mxu0 0.0
    %553 = vmatpush1.xpose.msra.mxu0 0.0
    %554 = vmatprep.subr.mxu0 0.0
    %555 = vmatpush1.xpose.msra.mxu0 0.0
    %556 = vmatprep.subr.mxu0 0.0
    %557 = vmatpush1.xpose.msra.mxu0 0.0
    %558 = vmatprep.subr.mxu0 0.0
    %559 = vmatpush1.xpose.msra.mxu0 0.0
    %560 = vmatprep.subr.mxu0 0.0
    %561 = vmatpush1.xpose.msra.mxu0 0.0
    %562 = vmatprep.subr.mxu0 0.0
    %563 = vmatpush1.xpose.msra.mxu0 0.0
    %564 = vmatprep.subr.mxu0 0.0
    %565 = vmatpush1.xpose.msra.mxu0 0.0
    %566 = vmatprep.subr.mxu0 0.0
    %567 = vmatpush1.xpose.msra.mxu0 0.0
    %568 = vmatprep.subr.mxu0 0.0
    %569 = vmatpush1.xpose.msra.mxu0 0.0
    %570 = vmatprep.subr.mxu0 0.0
    %571 = vmatpush1.xpose.msra.mxu0 0.0
    %572 = vmatprep.subr.mxu0 0.0
    %573 = vmatpush1.xpose.msra.mxu0 0.0
    %574 = vmatprep.subr.mxu0 0.0
    %575 = vmatpush1.xpose.msra.mxu0 0.0
    %576 = vmatprep.subr.mxu0 0.0
    %577 = vmatpush1.xpose.msra.mxu0 0.0
    %578 = vmatprep.subr.mxu0 0.0
    %579 = vmatpush1.xpose.msra.mxu0 0.0
    %580 = vmatprep.subr.mxu0 0.0
    %581 = vmatpush1.xpose.msra.mxu0 0.0
    %582 = vmatprep.subr.mxu0 0.0
    %583 = vmatpush1.xpose.msra.mxu0 0.0
    %584 = vmatprep.subr.mxu0 0.0
    %585 = vmatpush1.xpose.msra.mxu0 0.0
    %586 = vmatprep.subr.mxu0 0.0
    %587 = vmatpush1.xpose.msra.mxu0 0.0
    %588 = vmatprep.subr.mxu0 0.0
    %589 = vmatpush1.xpose.msra.mxu0 0.0
    %590 = vmatprep.subr.mxu0 0.0
    %591 = vmatpush1.xpose.msra.mxu0 0.0
    %592 = vmatprep.subr.mxu0 0.0
    %593 = vmatpush1.xpose.msra.mxu0 0.0
    %594 = vmatprep.subr.mxu0 0.0
    %595 = vmatpush1.xpose.msra.mxu0 0.0
    %596 = vmatprep.subr.mxu0 0.0
    %597 = vmatpush1.xpose.msra.mxu0 0.0
    %598 = vmatprep.subr.mxu0 0.0
    %599 = vmatpush1.xpose.msra.mxu0 0.0
    %600 = vmatprep.subr.mxu0 0.0
    %601 = vmatpush1.xpose.msra.mxu0 0.0
    %602 = vmatprep.subr.mxu0 0.0
    %603 = vmatpush1.xpose.msra.mxu0 0.0
    %604 = vmatprep.subr.mxu0 0.0
    %605 = vmatpush1.xpose.msra.mxu0 0.0
    %606 = vmatprep.subr.mxu0 0.0
    %607 = vmatpush1.xpose.msra.mxu0 0.0
    %608 = vmatprep.mubr.f32.mxu0 0.0
    %609 = vmatmul.mubr.f32.gmra.mrb[0].mxu0 %v542
    %v610 = vpop.f32.mrb[0].mxu0
    %v611 = vadd.f32 0.0, %v610
    %v612 = vpop.f32.mrb[0].mxu0
    %613 = vdwg.mxu0
    %v614 = vsel %vm191, %v611, -1e+30
    %v615 = vsel %vm274, %v614, -inf
    %616 = vmax.xlane.f32.xlu0 %v615
    %v617 = vpop.xlane.xlu0 %616
    %v618 = vsub.f32 %v614, %v617
    %v619 = vmul.f32 %v618, 1.442695
    %v620 = vpow.pop %v619
    %v621 = vsel %vm274, %v620, 0.0
    %622 = vadd.xlane.f32.xlu0 %v621
    %v623 = vpop.xlane.xlu0 %622
    %v624 = vrcp.pop %v623
    %v625 = vmul.f32 %v620, %v624
    %s626 = scalar_lea.vmem %s12, 16
    %627 = vst.msk [vmem:[%s626] sm:$0x3f] %vm274, %v625
    %v628 = vsel %vm539, %v288, 0.0
    %v630 = vsel %vm383, %v625, 0
    %v633 = vsel %vm387, %v628, 0
    %635 = vmatprep.subr.mxu0 0.0
    %636 = vmatpush1.msra.mxu0 %v633
    %637 = vmatprep.subr.mxu0 0.0
    %638 = vmatpush1.msra.mxu0 0.0
    %639 = vmatprep.subr.mxu0 0.0
    %640 = vmatpush1.msra.mxu0 0.0
    %641 = vmatprep.subr.mxu0 0.0
    %642 = vmatpush1.msra.mxu0 0.0
    %643 = vmatprep.subr.mxu0 0.0
    %644 = vmatpush1.msra.mxu0 0.0
    %645 = vmatprep.subr.mxu0 0.0
    %646 = vmatpush1.msra.mxu0 0.0
    %647 = vmatprep.subr.mxu0 0.0
    %648 = vmatpush1.msra.mxu0 0.0
    %649 = vmatprep.subr.mxu0 0.0
    %650 = vmatpush1.msra.mxu0 0.0
    %651 = vmatprep.subr.mxu0 0.0
    %652 = vmatpush1.msra.mxu0 0.0
    %653 = vmatprep.subr.mxu0 0.0
    %654 = vmatpush1.msra.mxu0 0.0
    %655 = vmatprep.subr.mxu0 0.0
    %656 = vmatpush1.msra.mxu0 0.0
    %657 = vmatprep.subr.mxu0 0.0
    %658 = vmatpush1.msra.mxu0 0.0
    %659 = vmatprep.subr.mxu0 0.0
    %660 = vmatpush1.msra.mxu0 0.0
    %661 = vmatprep.subr.mxu0 0.0
    %662 = vmatpush1.msra.mxu0 0.0
    %663 = vmatprep.subr.mxu0 0.0
    %664 = vmatpush1.msra.mxu0 0.0
    %665 = vmatprep.subr.mxu0 0.0
    %666 = vmatpush1.msra.mxu0 0.0
    %667 = vmatprep.subr.mxu0 0.0
    %668 = vmatpush1.msra.mxu0 0.0
    %669 = vmatprep.subr.mxu0 0.0
    %670 = vmatpush1.msra.mxu0 0.0
    %671 = vmatprep.subr.mxu0 0.0
    %672 = vmatpush1.msra.mxu0 0.0
    %673 = vmatprep.subr.mxu0 0.0
    %674 = vmatpush1.msra.mxu0 0.0
    %675 = vmatprep.subr.mxu0 0.0
    %676 = vmatpush1.msra.mxu0 0.0
    %677 = vmatprep.subr.mxu0 0.0
    %678 = vmatpush1.msra.mxu0 0.0
    %679 = vmatprep.subr.mxu0 0.0
    %680 = vmatpush1.msra.mxu0 0.0
    %681 = vmatprep.subr.mxu0 0.0
    %682 = vmatpush1.msra.mxu0 0.0
    %683 = vmatprep.subr.mxu0 0.0
    %684 = vmatpush1.msra.mxu0 0.0
    %685 = vmatprep.subr.mxu0 0.0
    %686 = vmatpush1.msra.mxu0 0.0
    %687 = vmatprep.subr.mxu0 0.0
    %688 = vmatpush1.msra.mxu0 0.0
    %689 = vmatprep.subr.mxu0 0.0
    %690 = vmatpush1.msra.mxu0 0.0
    %691 = vmatprep.subr.mxu0 0.0
    %692 = vmatpush1.msra.mxu0 0.0
    %693 = vmatprep.subr.mxu0 0.0
    %694 = vmatpush1.msra.mxu0 0.0
    %695 = vmatprep.subr.mxu0 0.0
    %696 = vmatpush1.msra.mxu0 0.0
    %697 = vmatprep.subr.mxu0 0.0
    %698 = vmatpush1.msra.mxu0 0.0
    %699 = vmatprep.mubr.f32.mxu0 0.0
    %700 = vmatmul.mubr.f32.gmra.mrb[0].mxu0 %v630
    %v701 = vpop.f32.mrb[0].mxu0
    %v702 = vadd.f32 0.0, %v701
    %v703 = vpop.f32.mrb[0].mxu0
    %704 = vdwg.mxu0
    %v705 = vadd.f32 %v534, %v702
    %vm706 = vcmp.ge.s32.totalorder %v174, 24
    %vm707 = vcmp.lt.s32.totalorder %v174, 32
    %vm708 = vmand %vm706, %vm707
    %v709 = vsel %vm708, %v170, 0.0
    %v711 = vsel %vm99, %v709, 0
    %713 = vmatprep.subr.mxu0 0.0
    %714 = vmatpush1.xpose.msra.mxu0 %v201
    %715 = vmatprep.subr.mxu0 0.0
    %716 = vmatpush1.xpose.msra.mxu0 0.0
    %717 = vmatprep.subr.mxu0 0.0
    %718 = vmatpush1.xpose.msra.mxu0 0.0
    %719 = vmatprep.subr.mxu0 0.0
    %720 = vmatpush1.xpose.msra.mxu0 0.0
    %721 = vmatprep.subr.mxu0 0.0
    %722 = vmatpush1.xpose.msra.mxu0 0.0
    %723 = vmatprep.subr.mxu0 0.0
    %724 = vmatpush1.xpose.msra.mxu0 0.0
    %725 = vmatprep.subr.mxu0 0.0
    %726 = vmatpush1.xpose.msra.mxu0 0.0
    %727 = vmatprep.subr.mxu0 0.0
    %728 = vmatpush1.xpose.msra.mxu0 0.0
    %729 = vmatprep.subr.mxu0 0.0
    %730 = vmatpush1.xpose.msra.mxu0 0.0
    %731 = vmatprep.subr.mxu0 0.0
    %732 = vmatpush1.xpose.msra.mxu0 0.0
    %733 = vmatprep.subr.mxu0 0.0
    %734 = vmatpush1.xpose.msra.mxu0 0.0
    %735 = vmatprep.subr.mxu0 0.0
    %736 = vmatpush1.xpose.msra.mxu0 0.0
    %737 = vmatprep.subr.mxu0 0.0
    %738 = vmatpush1.xpose.msra.mxu0 0.0
    %739 = vmatprep.subr.mxu0 0.0
    %740 = vmatpush1.xpose.msra.mxu0 0.0
    %741 = vmatprep.subr.mxu0 0.0
    %742 = vmatpush1.xpose.msra.mxu0 0.0
    %743 = vmatprep.subr.mxu0 0.0
    %744 = vmatpush1.xpose.msra.mxu0 0.0
    %745 = vmatprep.subr.mxu0 0.0
    %746 = vmatpush1.xpose.msra.mxu0 0.0
    %747 = vmatprep.subr.mxu0 0.0
    %748 = vmatpush1.xpose.msra.mxu0 0.0
    %749 = vmatprep.subr.mxu0 0.0
    %750 = vmatpush1.xpose.msra.mxu0 0.0
    %751 = vmatprep.subr.mxu0 0.0
    %752 = vmatpush1.xpose.msra.mxu0 0.0
    %753 = vmatprep.subr.mxu0 0.0
    %754 = vmatpush1.xpose.msra.mxu0 0.0
    %755 = vmatprep.subr.mxu0 0.0
    %756 = vmatpush1.xpose.msra.mxu0 0.0
    %757 = vmatprep.subr.mxu0 0.0
    %758 = vmatpush1.xpose.msra.mxu0 0.0
    %759 = vmatprep.subr.mxu0 0.0
    %760 = vmatpush1.xpose.msra.mxu0 0.0
    %761 = vmatprep.subr.mxu0 0.0
    %762 = vmatpush1.xpose.msra.mxu0 0.0
    %763 = vmatprep.subr.mxu0 0.0
    %764 = vmatpush1.xpose.msra.mxu0 0.0
    %765 = vmatprep.subr.mxu0 0.0
    %766 = vmatpush1.xpose.msra.mxu0 0.0
    %767 = vmatprep.subr.mxu0 0.0
    %768 = vmatpush1.xpose.msra.mxu0 0.0
    %769 = vmatprep.subr.mxu0 0.0
    %770 = vmatpush1.xpose.msra.mxu0 0.0
    %771 = vmatprep.subr.mxu0 0.0
    %772 = vmatpush1.xpose.msra.mxu0 0.0
    %773 = vmatprep.subr.mxu0 0.0
    %774 = vmatpush1.xpose.msra.mxu0 0.0
    %775 = vmatprep.subr.mxu0 0.0
    %776 = vmatpush1.xpose.msra.mxu0 0.0
    %777 = vmatprep.mubr.f32.mxu0 0.0
    %778 = vmatmul.mubr.f32.gmra.mrb[0].mxu0 %v711
    %v779 = vpop.f32.mrb[0].mxu0
    %v780 = vadd.f32 0.0, %v779
    %v781 = vpop.f32.mrb[0].mxu0
    %782 = vdwg.mxu0
    %v783 = vsel %vm191, %v780, -1e+30
    %v784 = vsel %vm274, %v783, -inf
    %785 = vmax.xlane.f32.xlu0 %v784
    %v786 = vpop.xlane.xlu0 %785
    %v787 = vsub.f32 %v783, %v786
    %v788 = vmul.f32 %v787, 1.442695
    %v789 = vpow.pop %v788
    %v790 = vsel %vm274, %v789, 0.0
    %791 = vadd.xlane.f32.xlu0 %v790
    %v792 = vpop.xlane.xlu0 %791
    %v793 = vrcp.pop %v792
    %v794 = vmul.f32 %v789, %v793
    %s795 = scalar_lea.vmem %s12, 24
    %796 = vst.msk [vmem:[%s795] sm:$0x3f] %vm274, %v794
    %v797 = vsel %vm708, %v288, 0.0
    %v799 = vsel %vm383, %v794, 0
    %v802 = vsel %vm387, %v797, 0
    %804 = vmatprep.subr.mxu0 0.0
    %805 = vmatpush1.msra.mxu0 %v802
    %806 = vmatprep.subr.mxu0 0.0
    %807 = vmatpush1.msra.mxu0 0.0
    %808 = vmatprep.subr.mxu0 0.0
    %809 = vmatpush1.msra.mxu0 0.0
    %810 = vmatprep.subr.mxu0 0.0
    %811 = vmatpush1.msra.mxu0 0.0
    %812 = vmatprep.subr.mxu0 0.0
    %813 = vmatpush1.msra.mxu0 0.0
    %814 = vmatprep.subr.mxu0 0.0
    %815 = vmatpush1.msra.mxu0 0.0
    %816 = vmatprep.subr.mxu0 0.0
    %817 = vmatpush1.msra.mxu0 0.0
    %818 = vmatprep.subr.mxu0 0.0
    %819 = vmatpush1.msra.mxu0 0.0
    %820 = vmatprep.subr.mxu0 0.0
    %821 = vmatpush1.msra.mxu0 0.0
    %822 = vmatprep.subr.mxu0 0.0
    %823 = vmatpush1.msra.mxu0 0.0
    %824 = vmatprep.subr.mxu0 0.0
    %825 = vmatpush1.msra.mxu0 0.0
    %826 = vmatprep.subr.mxu0 0.0
    %827 = vmatpush1.msra.mxu0 0.0
    %828 = vmatprep.subr.mxu0 0.0
    %829 = vmatpush1.msra.mxu0 0.0
    %830 = vmatprep.subr.mxu0 0.0
    %831 = vmatpush1.msra.mxu0 0.0
    %832 = vmatprep.subr.mxu0 0.0
    %833 = vmatpush1.msra.mxu0 0.0
    %834 = vmatprep.subr.mxu0 0.0
    %835 = vmatpush1.msra.mxu0 0.0
    %836 = vmatprep.subr.mxu0 0.0
    %837 = vmatpush1.msra.mxu0 0.0
    %838 = vmatprep.subr.mxu0 0.0
    %839 = vmatpush1.msra.mxu0 0.0
    %840 = vmatprep.subr.mxu0 0.0
    %841 = vmatpush1.msra.mxu0 0.0
    %842 = vmatprep.subr.mxu0 0.0
    %843 = vmatpush1.msra.mxu0 0.0
    %844 = vmatprep.subr.mxu0 0.0
    %845 = vmatpush1.msra.mxu0 0.0
    %846 = vmatprep.subr.mxu0 0.0
    %847 = vmatpush1.msra.mxu0 0.0
    %848 = vmatprep.subr.mxu0 0.0
    %849 = vmatpush1.msra.mxu0 0.0
    %850 = vmatprep.subr.mxu0 0.0
    %851 = vmatpush1.msra.mxu0 0.0
    %852 = vmatprep.subr.mxu0 0.0
    %853 = vmatpush1.msra.mxu0 0.0
    %854 = vmatprep.subr.mxu0 0.0
    %855 = vmatpush1.msra.mxu0 0.0
    %856 = vmatprep.subr.mxu0 0.0
    %857 = vmatpush1.msra.mxu0 0.0
    %858 = vmatprep.subr.mxu0 0.0
    %859 = vmatpush1.msra.mxu0 0.0
    %860 = vmatprep.subr.mxu0 0.0
    %861 = vmatpush1.msra.mxu0 0.0
    %862 = vmatprep.subr.mxu0 0.0
    %863 = vmatpush1.msra.mxu0 0.0
    %864 = vmatprep.subr.mxu0 0.0
    %865 = vmatpush1.msra.mxu0 0.0
    %866 = vmatprep.subr.mxu0 0.0
    %867 = vmatpush1.msra.mxu0 0.0
    %868 = vmatprep.mubr.f32.mxu0 0.0
    %869 = vmatmul.mubr.f32.gmra.mrb[0].mxu0 %v799
    %v870 = vpop.f32.mrb[0].mxu0
    %v871 = vadd.f32 0.0, %v870
    %v872 = vpop.f32.mrb[0].mxu0
    %873 = vdwg.mxu0
    %v874 = vadd.f32 %v705, %v871
    %v875 = vld [vmem:[%s4] sm:$0x1]
    %v876 = vld [vmem:[%s4 + $0x1] sm:$0x1]
    %v877 = vld [vmem:[%s4 + $0x2] sm:$0x1]
    %v878 = vld [vmem:[%s4 + $0x3] sm:$0x1]
    %v879 = vld [vmem:[%s4 + $0x4] sm:$0x1]
    %v880 = vld [vmem:[%s4 + $0x5] sm:$0x1]
    %v881 = vld [vmem:[%s3] sm:$0xff]
    %v882 = vld [vmem:[%s3 + $0x8] sm:$0xff]
    %v883 = vld [vmem:[%s3 + $0x10] sm:$0xff]
    %v884 = vld [vmem:[%s3 + $0x18] sm:$0xff]
    %v885 = vlaneseq
    %v886 = vshrl.u32 %v885, 7
    %v887 = vsub.s32 0, %v886
    %v888 = vrot.slane %v875, %v887
    %v890 = vsel %vm99, %v874, 0
    %892 = vmatprep.subr.mxu0 0.0
    %893 = vmatpush1.msra.mxu0 %v881
    %894 = vmatprep.subr.mxu0 0.0
    %895 = vmatpush1.msra.mxu0 %v882
    %896 = vmatprep.subr.mxu0 0.0
    %897 = vmatpush1.msra.mxu0 %v883
    %898 = vmatprep.subr.mxu0 0.0
    %899 = vmatpush1.msra.mxu0 %v884
    %900 = vmatprep.subr.mxu0 0.0
    %901 = vmatpush1.msra.mxu0 0.0
    %902 = vmatprep.subr.mxu0 0.0
    %903 = vmatpush1.msra.mxu0 0.0
    %904 = vmatprep.subr.mxu0 0.0
    %905 = vmatpush1.msra.mxu0 0.0
    %906 = vmatprep.subr.mxu0 0.0
    %907 = vmatpush1.msra.mxu0 0.0
    %908 = vmatprep.subr.mxu0 0.0
    %909 = vmatpush1.msra.mxu0 0.0
    %910 = vmatprep.subr.mxu0 0.0
    %911 = vmatpush1.msra.mxu0 0.0
    %912 = vmatprep.subr.mxu0 0.0
    %913 = vmatpush1.msra.mxu0 0.0
    %914 = vmatprep.subr.mxu0 0.0
    %915 = vmatpush1.msra.mxu0 0.0
    %916 = vmatprep.subr.mxu0 0.0
    %917 = vmatpush1.msra.mxu0 0.0
    %918 = vmatprep.subr.mxu0 0.0
    %919 = vmatpush1.msra.mxu0 0.0
    %920 = vmatprep.subr.mxu0 0.0
    %921 = vmatpush1.msra.mxu0 0.0
    %922 = vmatprep.subr.mxu0 0.0
    %923 = vmatpush1.msra.mxu0 0.0
    %924 = vmatprep.subr.mxu0 0.0
    %925 = vmatpush1.msra.mxu0 0.0
    %926 = vmatprep.subr.mxu0 0.0
    %927 = vmatpush1.msra.mxu0 0.0
    %928 = vmatprep.subr.mxu0 0.0
    %929 = vmatpush1.msra.mxu0 0.0
    %930 = vmatprep.subr.mxu0 0.0
    %931 = vmatpush1.msra.mxu0 0.0
    %932 = vmatprep.subr.mxu0 0.0
    %933 = vmatpush1.msra.mxu0 0.0
    %934 = vmatprep.subr.mxu0 0.0
    %935 = vmatpush1.msra.mxu0 0.0
    %936 = vmatprep.subr.mxu0 0.0
    %937 = vmatpush1.msra.mxu0 0.0
    %938 = vmatprep.subr.mxu0 0.0
    %939 = vmatpush1.msra.mxu0 0.0
    %940 = vmatprep.subr.mxu0 0.0
    %941 = vmatpush1.msra.mxu0 0.0
    %942 = vmatprep.subr.mxu0 0.0
    %943 = vmatpush1.msra.mxu0 0.0
    %944 = vmatprep.subr.mxu0 0.0
    %945 = vmatpush1.msra.mxu0 0.0
    %946 = vmatprep.subr.mxu0 0.0
    %947 = vmatpush1.msra.mxu0 0.0
    %948 = vmatprep.subr.mxu0 0.0
    %949 = vmatpush1.msra.mxu0 0.0
    %950 = vmatprep.subr.mxu0 0.0
    %951 = vmatpush1.msra.mxu0 0.0
    %952 = vmatprep.subr.mxu0 0.0
    %953 = vmatpush1.msra.mxu0 0.0
    %954 = vmatprep.subr.mxu0 0.0
    %955 = vmatpush1.msra.mxu0 0.0
    %956 = vmatprep.mubr.f32.mxu0 0.0
    %957 = vmatmul.mubr.f32.gmra.mrb[0].mxu0 %v890
    %v958 = vpop.f32.mrb[0].mxu0
    %v959 = vadd.f32 %v888, %v958
    %v960 = vpop.f32.mrb[0].mxu0
    %961 = vdwg.mxu0
    %v962 = vadd.f32 %v959, %v87
    %vm963 = vcmask 259072
    %v964 = vsel %vm963, %v962, 0.0
    %965 = vadd.xlane.f32.xlu0 %v964
    %v966 = vpop.xlane.xlu0 %965
    %v967 = vrcp.pop 32.0
    %v968 = vmul.f32 %v966, %v967
    %v969 = vsub.f32 %v962, %v968
    %v970 = vmul.f32 %v969, %v969
    %v971 = vsel %vm963, %v970, 0.0
    %972 = vadd.xlane.f32.xlu0 %v971
    %v973 = vpop.xlane.xlu0 %972
    %v974 = vmul.f32 %v973, %v967
    %v975 = vadd.f32 %v974, 1e-12
    %v976 = vrsqrt.pop %v975
    %v977 = vmul.f32 %v969, %v976
    %v978 = vlaneseq
    %v979 = vshrl.u32 %v978, 7
    %v980 = vsub.s32 0, %v979
    %v981 = vrot.slane %v876, %v980
    %v982 = vmul.f32 %v977, %v981
    %v983 = vlaneseq
    %v984 = vshrl.u32 %v983, 7
    %v985 = vsub.s32 0, %v984
    %v986 = vrot.slane %v877, %v985
    %v987 = vadd.f32 %v982, %v986
    %v988 = vld [vmem:[%s5] sm:$0xff]
    %v989 = vld [vmem:[%s5 + $0x8] sm:$0xff]
    %v990 = vld [vmem:[%s5 + $0x10] sm:$0xff]
    %v991 = vld [vmem:[%s5 + $0x18] sm:$0xff]
    %v992 = vld [vmem:[#allocation4] sm:$0x1]
    %v994 = vlaneseq
    %v995 = vshrl.u32 %v994, 7
    %v996 = vsub.s32 0, %v995
    %v997 = vrot.slane %v992, %v996
    %v1000 = vsel %vm99, %v987, 0
    %1002 = vmatprep.subr.mxu0 0.0
    %1003 = vmatpush1.msra.mxu0 %v988
    %1004 = vmatprep.subr.mxu0 0.0
    %1005 = vmatpush1.msra.mxu0 %v989
    %1006 = vmatprep.subr.mxu0 0.0
    %1007 = vmatpush1.msra.mxu0 %v990
    %1008 = vmatprep.subr.mxu0 0.0
    %1009 = vmatpush1.msra.mxu0 %v991
    %1010 = vmatprep.subr.mxu0 0.0
    %1011 = vmatpush1.msra.mxu0 0.0
    %1012 = vmatprep.subr.mxu0 0.0
    %1013 = vmatpush1.msra.mxu0 0.0
    %1014 = vmatprep.subr.mxu0 0.0
    %1015 = vmatpush1.msra.mxu0 0.0
    %1016 = vmatprep.subr.mxu0 0.0
    %1017 = vmatpush1.msra.mxu0 0.0
    %1018 = vmatprep.subr.mxu0 0.0
    %1019 = vmatpush1.msra.mxu0 0.0
    %1020 = vmatprep.subr.mxu0 0.0
    %1021 = vmatpush1.msra.mxu0 0.0
    %1022 = vmatprep.subr.mxu0 0.0
    %1023 = vmatpush1.msra.mxu0 0.0
    %1024 = vmatprep.subr.mxu0 0.0
    %1025 = vmatpush1.msra.mxu0 0.0
    %1026 = vmatprep.subr.mxu0 0.0
    %1027 = vmatpush1.msra.mxu0 0.0
    %1028 = vmatprep.subr.mxu0 0.0
    %1029 = vmatpush1.msra.mxu0 0.0
    %1030 = vmatprep.subr.mxu0 0.0
    %1031 = vmatpush1.msra.mxu0 0.0
    %1032 = vmatprep.subr.mxu0 0.0
    %1033 = vmatpush1.msra.mxu0 0.0
    %1034 = vmatprep.subr.mxu0 0.0
    %1035 = vmatpush1.msra.mxu0 0.0
    %1036 = vmatprep.subr.mxu0 0.0
    %1037 = vmatpush1.msra.mxu0 0.0
    %1038 = vmatprep.subr.mxu0 0.0
    %1039 = vmatpush1.msra.mxu0 0.0
    %1040 = vmatprep.subr.mxu0 0.0
    %1041 = vmatpush1.msra.mxu0 0.0
    %1042 = vmatprep.subr.mxu0 0.0
    %1043 = vmatpush1.msra.mxu0 0.0
    %1044 = vmatprep.subr.mxu0 0.0
    %1045 = vmatpush1.msra.mxu0 0.0
    %1046 = vmatprep.subr.mxu0 0.0
    %1047 = vmatpush1.msra.mxu0 0.0
    %1048 = vmatprep.subr.mxu0 0.0
    %1049 = vmatpush1.msra.mxu0 0.0
    %1050 = vmatprep.subr.mxu0 0.0
    %1051 = vmatpush1.msra.mxu0 0.0
    %1052 = vmatprep.subr.mxu0 0.0
    %1053 = vmatpush1.msra.mxu0 0.0
    %1054 = vmatprep.subr.mxu0 0.0
    %1055 = vmatpush1.msra.mxu0 0.0
    %1056 = vmatprep.subr.mxu0 0.0
    %1057 = vmatpush1.msra.mxu0 0.0
    %1058 = vmatprep.subr.mxu0 0.0
    %1059 = vmatpush1.msra.mxu0 0.0
    %1060 = vmatprep.subr.mxu0 0.0
    %1061 = vmatpush1.msra.mxu0 0.0
    %1062 = vmatprep.subr.mxu0 0.0
    %1063 = vmatpush1.msra.mxu0 0.0
    %1064 = vmatprep.subr.mxu0 0.0
    %1065 = vmatpush1.msra.mxu0 0.0
    %1066 = vmatprep.mubr.f32.mxu0 0.0
    %1067 = vmatmul.mubr.f32.gmra.mrb[0].mxu0 %v1000
    %v1068 = vpop.f32.mrb[0].mxu0
    %v1069 = vadd.f32 %v997, %v1068
    %v1070 = vpop.f32.mrb[0].mxu0
    %1071 = vdwg.mxu0
    %v1072 = vmul.f32 %v1069, 0.5
    %v1073 = vmul.f32 %v1069, 0.044715
    %v1074 = vmul.f32 %v1073, %v1069
    %v1075 = vmul.f32 %v1074, %v1069
    %v1076 = vadd.f32 %v1069, %v1075
    %v1077 = vmul.f32 %v1076, 0.7978846
    %v1078 = vtanh.pop %v1077
    %v1079 = vadd.f32 %v1078, 1.0
    %v1080 = vmul.f32 %v1072, %v1079
    %v1081 = vld [vmem:[%s7] sm:$0xff]
    %v1082 = vld [vmem:[%s7 + $0x8] sm:$0xff]
    %v1083 = vld [vmem:[%s7 + $0x10] sm:$0xff]
    %v1084 = vld [vmem:[%s7 + $0x18] sm:$0xff]
    %v1085 = vld [vmem:[%s7 + $0x20] sm:$0xff]
    %v1086 = vld [vmem:[%s7 + $0x28] sm:$0xff]
    %v1087 = vld [vmem:[%s7 + $0x30] sm:$0xff]
    %v1088 = vld [vmem:[%s7 + $0x38] sm:$0xff]
    %v1089 = vlaneseq
    %v1090 = vshrl.u32 %v1089, 7
    %v1091 = vsub.s32 0, %v1090
    %v1092 = vrot.slane %v878, %v1091
    %vm1093 = vcmask 523264
    %v1095 = vsel %vm1093, %v1080, 0
    %1097 = vmatprep.subr.mxu0 0.0
    %1098 = vmatpush1.msra.mxu0 %v1081
    %1099 = vmatprep.subr.mxu0 0.0
    %1100 = vmatpush1.msra.mxu0 %v1082
    %1101 = vmatprep.subr.mxu0 0.0
    %1102 = vmatpush1.msra.mxu0 %v1083
    %1103 = vmatprep.subr.mxu0 0.0
    %1104 = vmatpush1.msra.mxu0 %v1084
    %1105 = vmatprep.subr.mxu0 0.0
    %1106 = vmatpush1.msra.mxu0 %v1085
    %1107 = vmatprep.subr.mxu0 0.0
    %1108 = vmatpush1.msra.mxu0 %v1086
    %1109 = vmatprep.subr.mxu0 0.0
    %1110 = vmatpush1.msra.mxu0 %v1087
    %1111 = vmatprep.subr.mxu0 0.0
    %1112 = vmatpush1.msra.mxu0 %v1088
    %1113 = vmatprep.subr.mxu0 0.0
    %1114 = vmatpush1.msra.mxu0 0.0
    %1115 = vmatprep.subr.mxu0 0.0
    %1116 = vmatpush1.msra.mxu0 0.0
    %1117 = vmatprep.subr.mxu0 0.0
    %1118 = vmatpush1.msra.mxu0 0.0
    %1119 = vmatprep.subr.mxu0 0.0
    %1120 = vmatpush1.msra.mxu0 0.0
    %1121 = vmatprep.subr.mxu0 0.0
    %1122 = vmatpush1.msra.mxu0 0.0
    %1123 = vmatprep.subr.mxu0 0.0
    %1124 = vmatpush1.msra.mxu0 0.0
    %1125 = vmatprep.subr.mxu0 0.0
    %1126 = vmatpush1.msra.mxu0 0.0
    %1127 = vmatprep.subr.mxu0 0.0
    %1128 = vmatpush1.msra.mxu0 0.0
    %1129 = vmatprep.subr.mxu0 0.0
    %1130 = vmatpush1.msra.mxu0 0.0
    %1131 = vmatprep.subr.mxu0 0.0
    %1132 = vmatpush1.msra.mxu0 0.0
    %1133 = vmatprep.subr.mxu0 0.0
    %1134 = vmatpush1.msra.mxu0 0.0
    %1135 = vmatprep.subr.mxu0 0.0
    %1136 = vmatpush1.msra.mxu0 0.0
    %1137 = vmatprep.subr.mxu0 0.0
    %1138 = vmatpush1.msra.mxu0 0.0
    %1139 = vmatprep.subr.mxu0 0.0
    %1140 = vmatpush1.msra.mxu0 0.0
    %1141 = vmatprep.subr.mxu0 0.0
    %1142 = vmatpush1.msra.mxu0 0.0
    %1143 = vmatprep.subr.mxu0 0.0
    %1144 = vmatpush1.msra.mxu0 0.0
    %1145 = vmatprep.subr.mxu0 0.0
    %1146 = vmatpush1.msra.mxu0 0.0
    %1147 = vmatprep.subr.mxu0 0.0
    %1148 = vmatpush1.msra.mxu0 0.0
    %1149 = vmatprep.subr.mxu0 0.0
    %1150 = vmatpush1.msra.mxu0 0.0
    %1151 = vmatprep.subr.mxu0 0.0
    %1152 = vmatpush1.msra.mxu0 0.0
    %1153 = vmatprep.subr.mxu0 0.0
    %1154 = vmatpush1.msra.mxu0 0.0
    %1155 = vmatprep.subr.mxu0 0.0
    %1156 = vmatpush1.msra.mxu0 0.0
    %1157 = vmatprep.subr.mxu0 0.0
    %1158 = vmatpush1.msra.mxu0 0.0
    %1159 = vmatprep.subr.mxu0 0.0
    %1160 = vmatpush1.msra.mxu0 0.0
    %1161 = vmatprep.mubr.f32.mxu0 0.0
    %1162 = vmatmul.mubr.f32.gmra.mrb[0].mxu0 %v1095
    %v1163 = vpop.f32.mrb[0].mxu0
    %v1164 = vadd.f32 %v1092, %v1163
    %v1165 = vpop.f32.mrb[0].mxu0
    %1166 = vdwg.mxu0
    %v1167 = vld [vmem:[#allocation6] sm:$0x3f]
    %v1168 = vld [vmem:[%s9] sm:$0x3f]
    %1170 = vset.pattern.permute.xlu0 6
    %1171 = vperm.xlu0 %1170, %v1167
    %v1172 = vpop.permute.xlu0 %1171
    %v1174 = vsel %vm383, %v1167, 0
    %v1177 = vsel %vm387, %v1164, 0
    %1179 = vmatprep.subr.mxu0 0.0
    %1180 = vmatpush1.msra.mxu0 %v1177
    %1181 = vmatprep.subr.mxu0 0.0
    %1182 = vmatpush1.msra.mxu0 0.0
    %1183 = vmatprep.subr.mxu0 0.0
    %1184 = vmatpush1.msra.mxu0 0.0
    %1185 = vmatprep.subr.mxu0 0.0
    %1186 = vmatpush1.msra.mxu0 0.0
    %1187 = vmatprep.subr.mxu0 0.0
    %1188 = vmatpush1.msra.mxu0 0.0
    %1189 = vmatprep.subr.mxu0 0.0
    %1190 = vmatpush1.msra.mxu0 0.0
    %1191 = vmatprep.subr.mxu0 0.0
    %1192 = vmatpush1.msra.mxu0 0.0
    %1193 = vmatprep.subr.mxu0 0.0
    %1194 = vmatpush1.msra.mxu0 0.0
    %1195 = vmatprep.subr.mxu0 0.0
    %1196 = vmatpush1.msra.mxu0 0.0
    %1197 = vmatprep.subr.mxu0 0.0
    %1198 = vmatpush1.msra.mxu0 0.0
    %1199 = vmatprep.subr.mxu0 0.0
    %1200 = vmatpush1.msra.mxu0 0.0
    %1201 = vmatprep.subr.mxu0 0.0
    %1202 = vmatpush1.msra.mxu0 0.0
    %1203 = vmatprep.subr.mxu0 0.0
    %1204 = vmatpush1.msra.mxu0 0.0
    %1205 = vmatprep.subr.mxu0 0.0
    %1206 = vmatpush1.msra.mxu0 0.0
    %1207 = vmatprep.subr.mxu0 0.0
    %1208 = vmatpush1.msra.mxu0 0.0
    %1209 = vmatprep.subr.mxu0 0.0
    %1210 = vmatpush1.msra.mxu0 0.0
    %1211 = vmatprep.subr.mxu0 0.0
    %1212 = vmatpush1.msra.mxu0 0.0
    %1213 = vmatprep.subr.mxu0 0.0
    %1214 = vmatpush1.msra.mxu0 0.0
    %1215 = vmatprep.subr.mxu0 0.0
    %1216 = vmatpush1.msra.mxu0 0.0
    %1217 = vmatprep.subr.mxu0 0.0
    %1218 = vmatpush1.msra.mxu0 0.0
    %1219 = vmatprep.subr.mxu0 0.0
    %1220 = vmatpush1.msra.mxu0 0.0
    %1221 = vmatprep.subr.mxu0 0.0
    %1222 = vmatpush1.msra.mxu0 0.0
    %1223 = vmatprep.subr.mxu0 0.0
    %1224 = vmatpush1.msra.mxu0 0.0
    %1225 = vmatprep.subr.mxu0 0.0
    %1226 = vmatpush1.msra.mxu0 0.0
    %1227 = vmatprep.subr.mxu0 0.0
    %1228 = vmatpush1.msra.mxu0 0.0
    %1229 = vmatprep.subr.mxu0 0.0
    %1230 = vmatpush1.msra.mxu0 0.0
    %1231 = vmatprep.subr.mxu0 0.0
    %1232 = vmatpush1.msra.mxu0 0.0
    %1233 = vmatprep.subr.mxu0 0.0
    %1234 = vmatpush1.msra.mxu0 0.0
    %1235 = vmatprep.subr.mxu0 0.0
    %1236 = vmatpush1.msra.mxu0 0.0
    %1237 = vmatprep.subr.mxu0 0.0
    %1238 = vmatpush1.msra.mxu0 0.0
    %1239 = vmatprep.subr.mxu0 0.0
    %1240 = vmatpush1.msra.mxu0 0.0
    %1241 = vmatprep.subr.mxu0 0.0
    %1242 = vmatpush1.msra.mxu0 0.0
    %1243 = vmatprep.mubr.f32.mxu0 0.0
    %1244 = vmatmul.mubr.f32.gmra.mrb[0].mxu0 %v1174
    %v1245 = vpop.f32.mrb[0].mxu0
    %v1246 = vadd.f32 %v1172, %v1245
    %v1247 = vpop.f32.mrb[0].mxu0
    %1248 = vdwg.mxu0
    %1250 = vset.pattern.permute.xlu0 6
    %1251 = vperm.xlu0 %1250, %v1168
    %v1252 = vpop.permute.xlu0 %1251
    %v1254 = vsel %vm383, %v1168, 0
    %1256 = vmatprep.subr.mxu0 0.0
    %1257 = vmatpush1.msra.mxu0 %v1177
    %1258 = vmatprep.subr.mxu0 0.0
    %1259 = vmatpush1.msra.mxu0 0.0
    %1260 = vmatprep.subr.mxu0 0.0
    %1261 = vmatpush1.msra.mxu0 0.0
    %1262 = vmatprep.subr.mxu0 0.0
    %1263 = vmatpush1.msra.mxu0 0.0
    %1264 = vmatprep.subr.mxu0 0.0
    %1265 = vmatpush1.msra.mxu0 0.0
    %1266 = vmatprep.subr.mxu0 0.0
    %1267 = vmatpush1.msra.mxu0 0.0
    %1268 = vmatprep.subr.mxu0 0.0
    %1269 = vmatpush1.msra.mxu0 0.0
    %1270 = vmatprep.subr.mxu0 0.0
    %1271 = vmatpush1.msra.mxu0 0.0
    %1272 = vmatprep.subr.mxu0 0.0
    %1273 = vmatpush1.msra.mxu0 0.0
    %1274 = vmatprep.subr.mxu0 0.0
    %1275 = vmatpush1.msra.mxu0 0.0
    %1276 = vmatprep.subr.mxu0 0.0
    %1277 = vmatpush1.msra.mxu0 0.0
    %1278 = vmatprep.subr.mxu0 0.0
    %1279 = vmatpush1.msra.mxu0 0.0
    %1280 = vmatprep.subr.mxu0 0.0
    %1281 = vmatpush1.msra.mxu0 0.0
    %1282 = vmatprep.subr.mxu0 0.0
    %1283 = vmatpush1.msra.mxu0 0.0
    %1284 = vmatprep.subr.mxu0 0.0
    %1285 = vmatpush1.msra.mxu0 0.0
    %1286 = vmatprep.subr.mxu0 0.0
    %1287 = vmatpush1.msra.mxu0 0.0
    %1288 = vmatprep.subr.mxu0 0.0
    %1289 = vmatpush1.msra.mxu0 0.0
    %1290 = vmatprep.subr.mxu0 0.0
    %1291 = vmatpush1.msra.mxu0 0.0
    %1292 = vmatprep.subr.mxu0 0.0
    %1293 = vmatpush1.msra.mxu0 0.0
    %1294 = vmatprep.subr.mxu0 0.0
    %1295 = vmatpush1.msra.mxu0 0.0
    %1296 = vmatprep.subr.mxu0 0.0
    %1297 = vmatpush1.msra.mxu0 0.0
    %1298 = vmatprep.subr.mxu0 0.0
    %1299 = vmatpush1.msra.mxu0 0.0
    %1300 = vmatprep.subr.mxu0 0.0
    %1301 = vmatpush1.msra.mxu0 0.0
    %1302 = vmatprep.subr.mxu0 0.0
    %1303 = vmatpush1.msra.mxu0 0.0
    %1304 = vmatprep.subr.mxu0 0.0
    %1305 = vmatpush1.msra.mxu0 0.0
    %1306 = vmatprep.subr.mxu0 0.0
    %1307 = vmatpush1.msra.mxu0 0.0
    %1308 = vmatprep.subr.mxu0 0.0
    %1309 = vmatpush1.msra.mxu0 0.0
    %1310 = vmatprep.subr.mxu0 0.0
    %1311 = vmatpush1.msra.mxu0 0.0
    %1312 = vmatprep.subr.mxu0 0.0
    %1313 = vmatpush1.msra.mxu0 0.0
    %1314 = vmatprep.subr.mxu0 0.0
    %1315 = vmatpush1.msra.mxu0 0.0
    %1316 = vmatprep.subr.mxu0 0.0
    %1317 = vmatpush1.msra.mxu0 0.0
    %1318 = vmatprep.subr.mxu0 0.0
    %1319 = vmatpush1.msra.mxu0 0.0
    %1320 = vmatprep.mubr.f32.mxu0 0.0
    %1321 = vmatmul.mubr.f32.gmra.mrb[0].mxu0 %v1254
    %v1322 = vpop.f32.mrb[0].mxu0
    %v1323 = vadd.f32 %v1252, %v1322
    %v1324 = vpop.f32.mrb[0].mxu0
    %1325 = vdwg.mxu0
    %v1326 = vsub.f32 0.0, %v1323
    %v1327 = vmul.f32 %v1326, 1.442695
    %v1328 = vpow.pop %v1327
    %v1329 = vadd.f32 %v1328, 1.0
    %v1330 = vrcp.pop %v1329
    %v1331 = vmul.f32 1.0, %v1330
    %v1332 = vmul.f32 %v1246, %v1331
    %v1333 = vld [vmem:[#allocation7] sm:$0x3f]
    %1335 = vrot.lane.b32.xlu0 %v1332, 15
    %v1336 = vpop.permute.xlu0 %1335
    %vm1338 = vcmask 121856
    %v1339 = vsel %vm1338, 0.0, %v1336
    %vm1340 = vcmask 384000
    %v1341 = vsel %vm1340, %v1339, 0.0
    %1343 = vset.pattern.permute.xlu0 0
    %1344 = vperm.xlu0 %1343, %v1333
    %v1345 = vpop.permute.xlu0 %1344
    %v1347 = vmul.f32 %v1341, %v1345
    %v1348 = vadd.f32 %v1347, 0.0
    %1349 = vset.pattern.permute.xlu0 1
    %1350 = vperm.xlu0 %1349, %v1333
    %v1351 = vpop.permute.xlu0 %1350
    %v1353 = vmul.f32 %v1341, %v1351
    %1355 = vrot.lane.b32.xlu0 %v1353, 127
    %v1356 = vpop.permute.xlu0 %1355
    %v1358 = vadd.f32 %v1348, %v1356
    %1359 = vset.pattern.permute.xlu0 2
    %1360 = vperm.xlu0 %1359, %v1333
    %v1361 = vpop.permute.xlu0 %1360
    %v1363 = vmul.f32 %v1341, %v1361
    %1365 = vrot.lane.b32.xlu0 %v1363, 126
    %v1366 = vpop.permute.xlu0 %1365
    %v1368 = vadd.f32 %v1358, %v1366
    %1369 = vset.pattern.permute.xlu0 3
    %1370 = vperm.xlu0 %1369, %v1333
    %v1371 = vpop.permute.xlu0 %1370
    %v1373 = vmul.f32 %v1341, %v1371
    %1375 = vrot.lane.b32.xlu0 %v1373, 125
    %v1376 = vpop.permute.xlu0 %1375
    %v1378 = vadd.f32 %v1368, %v1376
    %1379 = vset.pattern.permute.xlu0 4
    %1380 = vperm.xlu0 %1379, %v1333
    %v1381 = vpop.permute.xlu0 %1380
    %v1383 = vmul.f32 %v1341, %v1381
    %1385 = vrot.lane.b32.xlu0 %v1383, 124
    %v1386 = vpop.permute.xlu0 %1385
    %v1388 = vadd.f32 %v1378, %v1386
    %1389 = vset.pattern.permute.xlu0 5
    %1390 = vperm.xlu0 %1389, %v1333
    %v1391 = vpop.permute.xlu0 %1390
    %v1393 = vmul.f32 %v1341, %v1391
    %1395 = vrot.lane.b32.xlu0 %v1393, 123
    %v1396 = vpop.permute.xlu0 %1395
    %v1398 = vadd.f32 %v1388, %v1396
    %1399 = vset.pattern.permute.xlu0 6
    %1400 = vperm.xlu0 %1399, %v1333
    %v1401 = vpop.permute.xlu0 %1400
    %v1403 = vmul.f32 %v1341, %v1401
    %1405 = vrot.lane.b32.xlu0 %v1403, 122
    %v1406 = vpop.permute.xlu0 %1405
    %v1408 = vadd.f32 %v1398, %v1406
    %1409 = vset.pattern.permute.xlu0 7
    %1410 = vperm.xlu0 %1409, %v1333
    %v1411 = vpop.permute.xlu0 %1410
    %v1413 = vmul.f32 %v1341, %v1411
    %1415 = vrot.lane.b32.xlu0 %v1413, 121
    %v1416 = vpop.permute.xlu0 %1415
    %v1418 = vadd.f32 %v1408, %v1416
    %1419 = vset.pattern.permute.xlu0 8
    %1420 = vperm.xlu0 %1419, %v1333
    %v1421 = vpop.permute.xlu0 %1420
    %v1423 = vmul.f32 %v1341, %v1421
    %1425 = vrot.lane.b32.xlu0 %v1423, 120
    %v1426 = vpop.permute.xlu0 %1425
    %v1428 = vadd.f32 %v1418, %v1426
    %1429 = vset.pattern.permute.xlu0 9
    %1430 = vperm.xlu0 %1429, %v1333
    %v1431 = vpop.permute.xlu0 %1430
    %v1433 = vmul.f32 %v1341, %v1431
    %1435 = vrot.lane.b32.xlu0 %v1433, 119
    %v1436 = vpop.permute.xlu0 %1435
    %v1438 = vadd.f32 %v1428, %v1436
    %1439 = vset.pattern.permute.xlu0 10
    %1440 = vperm.xlu0 %1439, %v1333
    %v1441 = vpop.permute.xlu0 %1440
    %v1443 = vmul.f32 %v1341, %v1441
    %1445 = vrot.lane.b32.xlu0 %v1443, 118
    %v1446 = vpop.permute.xlu0 %1445
    %v1448 = vadd.f32 %v1438, %v1446
    %1449 = vset.pattern.permute.xlu0 11
    %1450 = vperm.xlu0 %1449, %v1333
    %v1451 = vpop.permute.xlu0 %1450
    %v1453 = vmul.f32 %v1341, %v1451
    %1455 = vrot.lane.b32.xlu0 %v1453, 117
    %v1456 = vpop.permute.xlu0 %1455
    %v1458 = vadd.f32 %v1448, %v1456
    %1459 = vset.pattern.permute.xlu0 12
    %1460 = vperm.xlu0 %1459, %v1333
    %v1461 = vpop.permute.xlu0 %1460
    %v1463 = vmul.f32 %v1341, %v1461
    %1465 = vrot.lane.b32.xlu0 %v1463, 116
    %v1466 = vpop.permute.xlu0 %1465
    %v1468 = vadd.f32 %v1458, %v1466
    %1469 = vset.pattern.permute.xlu0 13
    %1470 = vperm.xlu0 %1469, %v1333
    %v1471 = vpop.permute.xlu0 %1470
    %v1473 = vmul.f32 %v1341, %v1471
    %1475 = vrot.lane.b32.xlu0 %v1473, 115
    %v1476 = vpop.permute.xlu0 %1475
    %v1478 = vadd.f32 %v1468, %v1476
    %1479 = vset.pattern.permute.xlu0 14
    %1480 = vperm.xlu0 %1479, %v1333
    %v1481 = vpop.permute.xlu0 %1480
    %v1483 = vmul.f32 %v1341, %v1481
    %1485 = vrot.lane.b32.xlu0 %v1483, 114
    %v1486 = vpop.permute.xlu0 %1485
    %v1488 = vadd.f32 %v1478, %v1486
    %1489 = vset.pattern.permute.xlu0 15
    %1490 = vperm.xlu0 %1489, %v1333
    %v1491 = vpop.permute.xlu0 %1490
    %v1493 = vmul.f32 %v1341, %v1491
    %1495 = vrot.lane.b32.xlu0 %v1493, 113
    %v1496 = vpop.permute.xlu0 %1495
    %v1498 = vadd.f32 %v1488, %v1496
    %1499 = vset.pattern.permute.xlu0 16
    %1500 = vperm.xlu0 %1499, %v1333
    %v1501 = vpop.permute.xlu0 %1500
    %v1503 = vmul.f32 %v1341, %v1501
    %1505 = vrot.lane.b32.xlu0 %v1503, 112
    %v1506 = vpop.permute.xlu0 %1505
    %v1508 = vadd.f32 %v1498, %v1506
    %1509 = vset.pattern.permute.xlu0 17
    %1510 = vperm.xlu0 %1509, %v1333
    %v1511 = vpop.permute.xlu0 %1510
    %v1513 = vmul.f32 %v1341, %v1511
    %1515 = vrot.lane.b32.xlu0 %v1513, 111
    %v1516 = vpop.permute.xlu0 %1515
    %v1518 = vadd.f32 %v1508, %v1516
    %1519 = vset.pattern.permute.xlu0 18
    %1520 = vperm.xlu0 %1519, %v1333
    %v1521 = vpop.permute.xlu0 %1520
    %v1523 = vmul.f32 %v1341, %v1521
    %1525 = vrot.lane.b32.xlu0 %v1523, 110
    %v1526 = vpop.permute.xlu0 %1525
    %v1528 = vadd.f32 %v1518, %v1526
    %1529 = vset.pattern.permute.xlu0 19
    %1530 = vperm.xlu0 %1529, %v1333
    %v1531 = vpop.permute.xlu0 %1530
    %v1533 = vmul.f32 %v1341, %v1531
    %1535 = vrot.lane.b32.xlu0 %v1533, 109
    %v1536 = vpop.permute.xlu0 %1535
    %v1538 = vadd.f32 %v1528, %v1536
    %1539 = vset.pattern.permute.xlu0 20
    %1540 = vperm.xlu0 %1539, %v1333
    %v1541 = vpop.permute.xlu0 %1540
    %v1543 = vmul.f32 %v1341, %v1541
    %1545 = vrot.lane.b32.xlu0 %v1543, 108
    %v1546 = vpop.permute.xlu0 %1545
    %v1548 = vadd.f32 %v1538, %v1546
    %1549 = vset.pattern.permute.xlu0 21
    %1550 = vperm.xlu0 %1549, %v1333
    %v1551 = vpop.permute.xlu0 %1550
    %v1553 = vmul.f32 %v1341, %v1551
    %1555 = vrot.lane.b32.xlu0 %v1553, 107
    %v1556 = vpop.permute.xlu0 %1555
    %v1558 = vadd.f32 %v1548, %v1556
    %1559 = vset.pattern.permute.xlu0 22
    %1560 = vperm.xlu0 %1559, %v1333
    %v1561 = vpop.permute.xlu0 %1560
    %v1563 = vmul.f32 %v1341, %v1561
    %1565 = vrot.lane.b32.xlu0 %v1563, 106
    %v1566 = vpop.permute.xlu0 %1565
    %v1568 = vadd.f32 %v1558, %v1566
    %1569 = vset.pattern.permute.xlu0 23
    %1570 = vperm.xlu0 %1569, %v1333
    %v1571 = vpop.permute.xlu0 %1570
    %v1573 = vmul.f32 %v1341, %v1571
    %1575 = vrot.lane.b32.xlu0 %v1573, 105
    %v1576 = vpop.permute.xlu0 %1575
    %v1578 = vadd.f32 %v1568, %v1576
    %1579 = vset.pattern.permute.xlu0 24
    %1580 = vperm.xlu0 %1579, %v1333
    %v1581 = vpop.permute.xlu0 %1580
    %v1583 = vmul.f32 %v1341, %v1581
    %1585 = vrot.lane.b32.xlu0 %v1583, 104
    %v1586 = vpop.permute.xlu0 %1585
    %v1588 = vadd.f32 %v1578, %v1586
    %1589 = vset.pattern.permute.xlu0 25
    %1590 = vperm.xlu0 %1589, %v1333
    %v1591 = vpop.permute.xlu0 %1590
    %v1593 = vmul.f32 %v1341, %v1591
    %1595 = vrot.lane.b32.xlu0 %v1593, 103
    %v1596 = vpop.permute.xlu0 %1595
    %v1598 = vadd.f32 %v1588, %v1596
    %1599 = vset.pattern.permute.xlu0 26
    %1600 = vperm.xlu0 %1599, %v1333
    %v1601 = vpop.permute.xlu0 %1600
    %v1603 = vmul.f32 %v1341, %v1601
    %1605 = vrot.lane.b32.xlu0 %v1603, 102
    %v1606 = vpop.permute.xlu0 %1605
    %v1608 = vadd.f32 %v1598, %v1606
    %1609 = vset.pattern.permute.xlu0 27
    %1610 = vperm.xlu0 %1609, %v1333
    %v1611 = vpop.permute.xlu0 %1610
    %v1613 = vmul.f32 %v1341, %v1611
    %1615 = vrot.lane.b32.xlu0 %v1613, 101
    %v1616 = vpop.permute.xlu0 %1615
    %v1618 = vadd.f32 %v1608, %v1616
    %1619 = vset.pattern.permute.xlu0 28
    %1620 = vperm.xlu0 %1619, %v1333
    %v1621 = vpop.permute.xlu0 %1620
    %v1623 = vmul.f32 %v1341, %v1621
    %1625 = vrot.lane.b32.xlu0 %v1623, 100
    %v1626 = vpop.permute.xlu0 %1625
    %v1628 = vadd.f32 %v1618, %v1626
    %1629 = vset.pattern.permute.xlu0 29
    %1630 = vperm.xlu0 %1629, %v1333
    %v1631 = vpop.permute.xlu0 %1630
    %v1633 = vmul.f32 %v1341, %v1631
    %1635 = vrot.lane.b32.xlu0 %v1633, 99
    %v1636 = vpop.permute.xlu0 %1635
    %v1638 = vadd.f32 %v1628, %v1636
    %1639 = vset.pattern.permute.xlu0 30
    %1640 = vperm.xlu0 %1639, %v1333
    %v1641 = vpop.permute.xlu0 %1640
    %v1643 = vmul.f32 %v1341, %v1641
    %1645 = vrot.lane.b32.xlu0 %v1643, 98
    %v1646 = vpop.permute.xlu0 %1645
    %v1648 = vadd.f32 %v1638, %v1646
    %1649 = vset.pattern.permute.xlu0 33
    %1650 = vperm.xlu0 %1649, %v1333
    %v1651 = vpop.permute.xlu0 %1650
    %v1653 = vsub.f32 %v1648, %v1651
    %v1654 = vadd.f32 %v1333, 1e-05
    %v1655 = vrsqrt.pop %v1654
    %1657 = vset.pattern.permute.xlu0 34
    %1658 = vperm.xlu0 %1657, %v1655
    %v1659 = vpop.permute.xlu0 %1658
    %v1661 = vmul.f32 %v1653, %v1659
    %1662 = vset.pattern.permute.xlu0 31
    %1663 = vperm.xlu0 %1662, %v1333
    %v1664 = vpop.permute.xlu0 %1663
    %v1666 = vmul.f32 %v1661, %v1664
    %1667 = vset.pattern.permute.xlu0 32
    %1668 = vperm.xlu0 %1667, %v1333
    %v1669 = vpop.permute.xlu0 %1668
    %v1671 = vadd.f32 %v1666, %v1669
    %1672 = vset.pattern.permute.xlu0 41
    %1673 = vperm.xlu0 %1672, %v1333
    %v1674 = vpop.permute.xlu0 %1673
    %1676 = vrot.lane.b32.xlu0 %v1333, 93
    %v1677 = vpop.permute.xlu0 %1676
    %v1678 = vsel %vm383, %v1677, 0
    %v1681 = vsel %vm387, %v1671, 0
    %1683 = vmatprep.subr.mxu0 0.0
    %1684 = vmatpush1.msra.mxu0 %v1681
    %1685 = vmatprep.subr.mxu0 0.0
    %1686 = vmatpush1.msra.mxu0 0.0
    %1687 = vmatprep.subr.mxu0 0.0
    %1688 = vmatpush1.msra.mxu0 0.0
    %1689 = vmatprep.subr.mxu0 0.0
    %1690 = vmatpush1.msra.mxu0 0.0
    %1691 = vmatprep.subr.mxu0 0.0
    %1692 = vmatpush1.msra.mxu0 0.0
    %1693 = vmatprep.subr.mxu0 0.0
    %1694 = vmatpush1.msra.mxu0 0.0
    %1695 = vmatprep.subr.mxu0 0.0
    %1696 = vmatpush1.msra.mxu0 0.0
    %1697 = vmatprep.subr.mxu0 0.0
    %1698 = vmatpush1.msra.mxu0 0.0
    %1699 = vmatprep.subr.mxu0 0.0
    %1700 = vmatpush1.msra.mxu0 0.0
    %1701 = vmatprep.subr.mxu0 0.0
    %1702 = vmatpush1.msra.mxu0 0.0
    %1703 = vmatprep.subr.mxu0 0.0
    %1704 = vmatpush1.msra.mxu0 0.0
    %1705 = vmatprep.subr.mxu0 0.0
    %1706 = vmatpush1.msra.mxu0 0.0
    %1707 = vmatprep.subr.mxu0 0.0
    %1708 = vmatpush1.msra.mxu0 0.0
    %1709 = vmatprep.subr.mxu0 0.0
    %1710 = vmatpush1.msra.mxu0 0.0
    %1711 = vmatprep.subr.mxu0 0.0
    %1712 = vmatpush1.msra.mxu0 0.0
    %1713 = vmatprep.subr.mxu0 0.0
    %1714 = vmatpush1.msra.mxu0 0.0
    %1715 = vmatprep.subr.mxu0 0.0
    %1716 = vmatpush1.msra.mxu0 0.0
    %1717 = vmatprep.subr.mxu0 0.0
    %1718 = vmatpush1.msra.mxu0 0.0
    %1719 = vmatprep.subr.mxu0 0.0
    %1720 = vmatpush1.msra.mxu0 0.0
    %1721 = vmatprep.subr.mxu0 0.0
    %1722 = vmatpush1.msra.mxu0 0.0
    %1723 = vmatprep.subr.mxu0 0.0
    %1724 = vmatpush1.msra.mxu0 0.0
    %1725 = vmatprep.subr.mxu0 0.0
    %1726 = vmatpush1.msra.mxu0 0.0
    %1727 = vmatprep.subr.mxu0 0.0
    %1728 = vmatpush1.msra.mxu0 0.0
    %1729 = vmatprep.subr.mxu0 0.0
    %1730 = vmatpush1.msra.mxu0 0.0
    %1731 = vmatprep.subr.mxu0 0.0
    %1732 = vmatpush1.msra.mxu0 0.0
    %1733 = vmatprep.subr.mxu0 0.0
    %1734 = vmatpush1.msra.mxu0 0.0
    %1735 = vmatprep.subr.mxu0 0.0
    %1736 = vmatpush1.msra.mxu0 0.0
    %1737 = vmatprep.subr.mxu0 0.0
    %1738 = vmatpush1.msra.mxu0 0.0
    %1739 = vmatprep.subr.mxu0 0.0
    %1740 = vmatpush1.msra.mxu0 0.0
    %1741 = vmatprep.subr.mxu0 0.0
    %1742 = vmatpush1.msra.mxu0 0.0
    %1743 = vmatprep.subr.mxu0 0.0
    %1744 = vmatpush1.msra.mxu0 0.0
    %1745 = vmatprep.subr.mxu0 0.0
    %1746 = vmatpush1.msra.mxu0 0.0
    %1747 = vmatprep.mubr.f32.mxu0 0.0
    %1748 = vmatmul.mubr.f32.gmra.mrb[0].mxu0 %v1678
    %v1749 = vpop.f32.mrb[0].mxu0
    %v1750 = vadd.f32 %v1674, %v1749
    %v1751 = vpop.f32.mrb[0].mxu0
    %1752 = vdwg.mxu0
    %v1753 = vadd.f32 %v1750, %v987
    %v1754 = vsel %vm963, %v1753, 0.0
    %1755 = vadd.xlane.f32.xlu0 %v1754
    %v1756 = vpop.xlane.xlu0 %1755
    %v1757 = vmul.f32 %v1756, %v967
    %v1758 = vsub.f32 %v1753, %v1757
    %v1759 = vmul.f32 %v1758, %v1758
    %v1760 = vsel %vm963, %v1759, 0.0
    %1761 = vadd.xlane.f32.xlu0 %v1760
    %v1762 = vpop.xlane.xlu0 %1761
    %v1763 = vmul.f32 %v1762, %v967
    %v1764 = vadd.f32 %v1763, 1e-12
    %v1765 = vrsqrt.pop %v1764
    %v1766 = vmul.f32 %v1758, %v1765
    %v1767 = vlaneseq
    %v1768 = vshrl.u32 %v1767, 7
    %v1769 = vsub.s32 0, %v1768
    %v1770 = vrot.slane %v879, %v1769
    %v1771 = vmul.f32 %v1766, %v1770
    %v1772 = vlaneseq
    %v1773 = vshrl.u32 %v1772, 7
    %v1774 = vsub.s32 0, %v1773
    %v1775 = vrot.slane %v880, %v1774
    %v1776 = vadd.f32 %v1771, %v1775
    %1777 = vst.msk [vmem:[%s11] sm:$0x3f] %vm963, %v1776
    // Predicated region
    $region62: #{tpu_custom_call.1} parent=1 // pred_check
      _
    $region63: #{tpu_custom_call.1} parent=1 // pred_check_branch
      %1779 = sbr.rel (0) target = $region65
    $region64: #{tpu_custom_call.1} parent=1 // pred_region
      _
    $region65: #{tpu_custom_call.1} parent=1 // pred_fallthru
      _
    // Predicated region
    $region66: #{tpu_custom_call.1} parent=1 // pred_check
      _
    $region67: #{tpu_custom_call.1} parent=1 // pred_check_branch
      %1781 = sbr.rel (0) target = $region69
    $region68: #{tpu_custom_call.1} parent=1 // pred_region
      _
    $region69: #{tpu_custom_call.1} parent=1 // pred_fallthru
      _
    // Predicated region
    $region70: #{tpu_custom_call.1} parent=1 // pred_check
      _
    $region71: #{tpu_custom_call.1} parent=1 // pred_check_branch
      %1783 = sbr.rel (0) target = $region73
    $region72: #{tpu_custom_call.1} parent=1 // pred_region
      _
    $region73: #{tpu_custom_call.1} parent=1 // pred_fallthru
      _
    // Predicated region
    $region74: #{tpu_custom_call.1} parent=1 // pred_check
      _
    $region75: #{tpu_custom_call.1} parent=1 // pred_check_branch
      %1785 = sbr.rel (0) target = $region77
    $region76: #{tpu_custom_call.1} parent=1 // pred_region
      _
    $region77: #{tpu_custom_call.1} parent=1 // pred_fallthru
      _
    %1786 = vsyncpa [#allocation3], 1
    %1787 = vsyncpa [#allocation5], 1
    %1788 = vsyncpa [#allocation8], 1

</llo_original>
